<compile_context>
chip_gen: v5e
topology: v5e:2x2
jax: 0.10.0
libtpu: 0.0.40
codegen_flags: <defaults>
</compile_context>

<pallas_src>
import functools

import jax
import jax.numpy as jnp
from jax.experimental import pallas as pl
from jax.experimental.pallas import tpu as pltpu


def _ln_proj_kernel(x_ref, w_ref, b_ref, o_ref, *, eps, half_dim):
    """One (tl, C) row slab: split channel halves, LayerNorm, project.

    gamma is pre-folded into w_ref (W' = gamma[:, None] * W.T) and beta into
    b_ref (b' = beta @ W.T); LN stats are computed in f32, matmul accumulates
    in f32.
    """
    D = half_dim
    w = w_ref[...]                        # (D, D), MXU feed dtype
    b = b_ref[...].astype(jnp.float32)    # (1, D)
    for h in range(2):                    # static unroll over the two halves
        xh = x_ref[:, h * D:(h + 1) * D].astype(jnp.float32)
        mean = jnp.mean(xh, axis=-1, keepdims=True)
        centered = xh - mean
        var = jnp.mean(centered * centered, axis=-1, keepdims=True)
        xn = centered * jax.lax.rsqrt(var + eps)
        out = jnp.dot(xn.astype(w.dtype), w, preferred_element_type=jnp.float32)
        o_ref[h] = (out + b).astype(o_ref.dtype)


def _vmem_plan():
    """Returns (tile_budget_bytes, vmem_limit_bytes, row_cap, two_core_hint)."""
    try:
        cap = int(pltpu.get_tpu_info().vmem_capacity_bytes)
    except Exception:
        cap = 64 << 20                     # conservative: assume v7x-sized VMEM
    if cap >= (96 << 20):                  # v5e / v6e: 128 MiB physical VMEM
        return 48 << 20, 64 << 20, 2048, False
    # v7x (64 MiB physical, 32 MiB scoped default) or unknown backend.
    return 22 << 20, 30 << 20, 512, True


def _pick_row_tile(L, D, x_itemsize, w_itemsize, budget, row_cap, sub, n_w_buf):
    """Largest legal row tile keeping pipeline buffers + temporaries in budget.

    Accounts for: double-buffered (tl, 2D) input and (2, tl, D) output pipeline
    buffers, the weight/bias (n_w_buf buffers), and ~6 f32 (tl, D) in-kernel
    temporaries (x-half, centered, xn, f32 matmul result, slack).
    """
    w_bytes = n_w_buf * (D * D * w_itemsize + D * 4)
    avail = max(budget - w_bytes, 2 << 20)
    per_row = 8 * D * x_itemsize + 6 * D * 4
    t = avail // per_row
    t = int(min(row_cap, max(sub, t)))
    t = (t // sub) * sub
    return L if t >= L else t


def patch_separate(x, w_reduction, norm_gamma, norm_beta, *, eps=1e-5,
                   bf16_matmul=True):
    """x: (B, L, C); w_reduction: (C//2, C//2) PyTorch Linear weight (out, in);
    norm_gamma, norm_beta: (C//2,). Returns (B, 2L, C//2).

    bf16_matmul: when x is float32, feed the MXU in bf16 (LN statistics and
    the accumulation stay f32).  Set False for strict f32 matmul numerics.
    """
    B, L, C = x.shape
    assert C % 2 == 0, "dim must be even"
    D = C // 2

    # Fold LayerNorm affine into the projection (exact in real arithmetic):
    #   (xn*gamma + beta) @ W.T == xn @ (gamma[:,None]*W.T) + beta @ W.T
    w_t = jnp.asarray(w_reduction, jnp.float32).T          # (D_in, D_out)
    gamma = jnp.asarray(norm_gamma, jnp.float32)
    beta = jnp.asarray(norm_beta, jnp.float32)
    mxu_dtype = x.dtype
    if bf16_matmul and x.dtype == jnp.float32:
        mxu_dtype = jnp.bfloat16
    w_prime = (gamma[:, None] * w_t).astype(mxu_dtype)     # (D, D)
    b_prime = (beta @ w_t).reshape(1, D)                     # f32, added post-dot

    x_itemsize = jnp.dtype(x.dtype).itemsize
    w_itemsize = jnp.dtype(mxu_dtype).itemsize
    sub = max(8, 32 // x_itemsize)                           # sublane multiple

    budget, vmem_limit, row_cap, two_core = _vmem_plan()
    tl = _pick_row_tile(L, D, x_itemsize, w_itemsize, budget, row_cap, sub,
                        n_w_buf=1)
    # Keep >=2 parallel grid steps so a 2-TensorCore part (v7x) is not idle.
    if two_core and B == 1 and tl >= L:
        half = -(-((L + 1) // 2) // sub) * sub
        if half < L:
            tl = half

    grid = (B, pl.cdiv(L, tl))
    n_rows = B * 2 * L
    cost = pl.CostEstimate(
        flops=2 * n_rows * D * D + 7 * n_rows * D,
        transcendentals=n_rows,
        bytes_accessed=(B * L * C + n_rows * D) * x_itemsize
        + D * D * w_itemsize + D * 4,
    )
    kernel = functools.partial(_ln_proj_kernel, eps=eps, half_dim=D)

    def _call(single_buffer_weights):
        # Constant-index weight/bias blocks: single-buffer them to save VMEM.
        w_kw = ({"pipeline_mode": pl.Buffered(1)}
                if single_buffer_weights else {})
        return pl.pallas_call(
            kernel,
            out_shape=jax.ShapeDtypeStruct((B, 2, L, D), x.dtype),
            grid=grid,
            in_specs=[
                # Full-row slab x[b, l*tl:(l+1)*tl, :] — contiguous HBM reads.
                pl.BlockSpec((None, tl, C), lambda b, l: (b, l, 0)),
                pl.BlockSpec((D, D), lambda b, l: (0, 0), **w_kw),   # W'
                pl.BlockSpec((1, D), lambda b, l: (0, 0), **w_kw),   # b'
            ],
            out_specs=pl.BlockSpec((None, 2, tl, D),
                                   lambda b, l: (b, 0, l, 0)),
            compiler_params=pltpu.CompilerParams(
                dimension_semantics=("parallel", "parallel"),
                vmem_limit_bytes=vmem_limit),
            cost_estimate=cost,
        )(x, w_prime, b_prime)

    try:
        out4 = _call(True)
    except Exception:
        # Guard for jax versions that reject single-buffered block specs; the
        # budget slack covers the extra weight buffer at typical D.
        out4 = _call(False)

    return out4.reshape(B, 2 * L, D)      # contiguous view: free


def patch_separate_ref(x, w_reduction, norm_gamma, norm_beta, eps=1e-5):
    """Pure-JAX reference matching the PyTorch forward."""
    B, L, C = x.shape
    D = C // 2
    x_r = x.reshape(B, L, 2, D).transpose(0, 2, 1, 3).reshape(B, 2 * L, D)
    xf = x_r.astype(jnp.float32)
    mean = jnp.mean(xf, axis=-1, keepdims=True)
    var = jnp.mean((xf - mean) ** 2, axis=-1, keepdims=True)
    xn = (xf - mean) * jax.lax.rsqrt(var + eps)
    y = xn * jnp.asarray(norm_gamma, jnp.float32) + jnp.asarray(norm_beta,
                                                                jnp.float32)
    out = y @ jnp.asarray(w_reduction, jnp.float32).T
    return out.astype(x.dtype)


if __name__ == "__main__":
    key = jax.random.PRNGKey(0)
    kx, kw, kg, kb = jax.random.split(key, 4)

    # Primary test: lane-dense D (C=256 -> D=128).
    B, L, C = 2, 64, 256
    D = C // 2
    x = jax.random.normal(kx, (B, L, C), dtype=jnp.float32)
    w_reduction = jax.random.normal(kw, (D, D), dtype=jnp.float32) * 0.02  # (out, in)
    norm_gamma = 1.0 + 0.1 * jax.random.normal(kg, (D,), dtype=jnp.float32)
    norm_beta = 0.1 * jax.random.normal(kb, (D,), dtype=jnp.float32)

    ref = patch_separate_ref(x, w_reduction, norm_gamma, norm_beta)

    # Default path: bf16 MXU feed (looser tolerance vs. f32 reference).
    out = jax.block_until_ready(
        patch_separate(x, w_reduction, norm_gamma, norm_beta))
    assert out.shape == (B, 2 * L, D), out.shape
    assert jnp.allclose(out, ref, atol=1e-2, rtol=1e-2), \
        float(jnp.max(jnp.abs(out - ref)))

    # Strict f32 matmul path (tight tolerance).
    out_f32 = jax.block_until_ready(
        patch_separate(x, w_reduction, norm_gamma, norm_beta,
                       bf16_matmul=False))
    assert jnp.allclose(out_f32, ref, atol=2e-4, rtol=2e-4), \
        float(jnp.max(jnp.abs(out_f32 - ref)))

    # Secondary test: small D (< 128, not a lane multiple) — exercises the
    # unified path's in-kernel channel-half slicing (no wrapper transpose).
    B2, L2, C2 = 2, 8, 64
    D2 = C2 // 2
    x2 = jax.random.normal(kx, (B2, L2, C2), dtype=jnp.float32)
    w2 = jax.random.normal(kw, (D2, D2), dtype=jnp.float32) * 0.02
    g2 = 1.0 + 0.1 * jax.random.normal(kg, (D2,), dtype=jnp.float32)
    b2 = 0.1 * jax.random.normal(kb, (D2,), dtype=jnp.float32)
    out2 = jax.block_until_ready(
        patch_separate(x2, w2, g2, b2, bf16_matmul=False))
    ref2 = patch_separate_ref(x2, w2, g2, b2)
    assert out2.shape == (B2, 2 * L2, D2), out2.shape
    assert jnp.allclose(out2, ref2, atol=2e-4, rtol=2e-4), \
        float(jnp.max(jnp.abs(out2 - ref2)))

    print("KERNEL_OK")
</pallas_src>

<mosaic_0001>
module attributes {stable_mosaic.version = 11 : i64} {
  func.func @_ln_proj_kernel(%arg0: i32, %arg1: i32, %arg2: memref<1x64x256xf32, #tpu.memory_space<vmem>>, %arg3: memref<128x128xbf16, #tpu.memory_space<vmem>>, %arg4: memref<1x128xf32, #tpu.memory_space<vmem>>, %arg5: memref<1x2x64x128xf32, #tpu.memory_space<vmem>>) attributes {dimension_semantics = [#tpu.dimension_semantics<parallel>, #tpu.dimension_semantics<parallel>], iteration_bounds = array<i64: 2, 1>, scalar_prefetch = 0 : i64, scratch_operands = 0 : i64, tpu.core_type = #tpu.core_type<tc>, window_params = [{transform_indices = @transform_0, window_bounds = array<i64: 1, 64, 256>}, {pipeline_mode = #tpu.pipeline_mode<synchronous>, transform_indices = @transform_1, window_bounds = array<i64: 128, 128>}, {pipeline_mode = #tpu.pipeline_mode<synchronous>, transform_indices = @transform_2, window_bounds = array<i64: 1, 128>}, {transform_indices = @transform_3, window_bounds = array<i64: 1, 2, 64, 128>}]} {
    %c0 = arith.constant 0 : index
    %c0_0 = arith.constant 0 : index
    %0 = vector.load %arg3[%c0, %c0_0] : memref<128x128xbf16, #tpu.memory_space<vmem>>, vector<128x128xbf16>
    %c0_1 = arith.constant 0 : index
    %c0_2 = arith.constant 0 : index
    %1 = vector.load %arg4[%c0_1, %c0_2] : memref<1x128xf32, #tpu.memory_space<vmem>>, vector<1x128xf32>
    %c0_3 = arith.constant 0 : index
    %c0_4 = arith.constant 0 : index
    %c0_5 = arith.constant 0 : index
    %2 = vector.load %arg2[%c0_3, %c0_4, %c0_5] : memref<1x64x256xf32, #tpu.memory_space<vmem>>, vector<1x64x128xf32>
    %3 = vector.shape_cast %2 : vector<1x64x128xf32> to vector<64x128xf32>
    %cst = arith.constant dense<0.000000e+00> : vector<64xf32>
    %4 = vector.multi_reduction <add>, %3, %cst [1] : vector<64x128xf32> to vector<64xf32>
    %5 = vector.shape_cast %4 : vector<64xf32> to vector<64x1xf32>
    %cst_6 = arith.constant 1.280000e+02 : f32
    %6 = vector.broadcast %cst_6 : f32 to vector<64x1xf32>
    %7 = arith.divf %5, %6 : vector<64x1xf32>
    %8 = vector.broadcast %7 : vector<64x1xf32> to vector<64x128xf32>
    %9 = arith.subf %3, %8 : vector<64x128xf32>
    %10 = arith.mulf %9, %9 : vector<64x128xf32>
    %cst_7 = arith.constant dense<0.000000e+00> : vector<64xf32>
    %11 = vector.multi_reduction <add>, %10, %cst_7 [1] : vector<64x128xf32> to vector<64xf32>
    %12 = vector.shape_cast %11 : vector<64xf32> to vector<64x1xf32>
    %cst_8 = arith.constant 1.280000e+02 : f32
    %13 = vector.broadcast %cst_8 : f32 to vector<64x1xf32>
    %14 = arith.divf %12, %13 : vector<64x1xf32>
    %cst_9 = arith.constant 9.99999974E-6 : f32
    %15 = vector.broadcast %cst_9 : f32 to vector<64x1xf32>
    %16 = arith.addf %14, %15 : vector<64x1xf32>
    %17 = math.rsqrt %16 : vector<64x1xf32>
    %18 = vector.broadcast %17 : vector<64x1xf32> to vector<64x128xf32>
    %19 = arith.mulf %9, %18 : vector<64x128xf32>
    %20 = arith.truncf %19 : vector<64x128xf32> to vector<64x128xbf16>
    %cst_10 = arith.constant dense<0.000000e+00> : vector<64x128xf32>
    %21 = tpu.matmul %20, %0, %cst_10 {dimension_numbers = #tpu.dot_dimension_numbers<[1], [0], [0], [1], [0, 0, 1, 1], [], []>} : vector<64x128xbf16>, vector<128x128xbf16>, vector<64x128xf32> -> vector<64x128xf32>
    %22 = vector.broadcast %1 : vector<1x128xf32> to vector<64x128xf32>
    %23 = arith.addf %21, %22 : vector<64x128xf32>
    %c0_11 = arith.constant 0 : index
    %c0_12 = arith.constant 0 : index
    %c0_13 = arith.constant 0 : index
    %c0_14 = arith.constant 0 : index
    %24 = vector.load %arg5[%c0_11, %c0_12, %c0_13, %c0_14] : memref<1x2x64x128xf32, #tpu.memory_space<vmem>>, vector<1x1x64x128xf32>
    %25 = vector.shape_cast %24 : vector<1x1x64x128xf32> to vector<64x128xf32>
    %26 = vector.shape_cast %23 : vector<64x128xf32> to vector<1x1x64x128xf32>
    tpu.vector_store %arg5[%c0_11, %c0_12, %c0_13, %c0_14], %26 {strides = array<i32>} : memref<1x2x64x128xf32, #tpu.memory_space<vmem>>, vector<1x1x64x128xf32>,
    %c0_15 = arith.constant 0 : index
    %c0_16 = arith.constant 0 : index
    %c128 = arith.constant 128 : index
    %27 = vector.load %arg2[%c0_15, %c0_16, %c128] : memref<1x64x256xf32, #tpu.memory_space<vmem>>, vector<1x64x128xf32>
    %28 = vector.shape_cast %27 : vector<1x64x128xf32> to vector<64x128xf32>
    %cst_17 = arith.constant dense<0.000000e+00> : vector<64xf32>
    %29 = vector.multi_reduction <add>, %28, %cst_17 [1] : vector<64x128xf32> to vector<64xf32>
    %30 = vector.shape_cast %29 : vector<64xf32> to vector<64x1xf32>
    %cst_18 = arith.constant 1.280000e+02 : f32
    %31 = vector.broadcast %cst_18 : f32 to vector<64x1xf32>
    %32 = arith.divf %30, %31 : vector<64x1xf32>
    %33 = vector.broadcast %32 : vector<64x1xf32> to vector<64x128xf32>
    %34 = arith.subf %28, %33 : vector<64x128xf32>
    %35 = arith.mulf %34, %34 : vector<64x128xf32>
    %cst_19 = arith.constant dense<0.000000e+00> : vector<64xf32>
    %36 = vector.multi_reduction <add>, %35, %cst_19 [1] : vector<64x128xf32> to vector<64xf32>
    %37 = vector.shape_cast %36 : vector<64xf32> to vector<64x1xf32>
    %cst_20 = arith.constant 1.280000e+02 : f32
    %38 = vector.broadcast %cst_20 : f32 to vector<64x1xf32>
    %39 = arith.divf %37, %38 : vector<64x1xf32>
    %cst_21 = arith.constant 9.99999974E-6 : f32
    %40 = vector.broadcast %cst_21 : f32 to vector<64x1xf32>
    %41 = arith.addf %39, %40 : vector<64x1xf32>
    %42 = math.rsqrt %41 : vector<64x1xf32>
    %43 = vector.broadcast %42 : vector<64x1xf32> to vector<64x128xf32>
    %44 = arith.mulf %34, %43 : vector<64x128xf32>
    %45 = arith.truncf %44 : vector<64x128xf32> to vector<64x128xbf16>
    %cst_22 = arith.constant dense<0.000000e+00> : vector<64x128xf32>
    %46 = tpu.matmul %45, %0, %cst_22 {dimension_numbers = #tpu.dot_dimension_numbers<[1], [0], [0], [1], [0, 0, 1, 1], [], []>} : vector<64x128xbf16>, vector<128x128xbf16>, vector<64x128xf32> -> vector<64x128xf32>
    %47 = vector.broadcast %1 : vector<1x128xf32> to vector<64x128xf32>
    %48 = arith.addf %46, %47 : vector<64x128xf32>
    %c0_23 = arith.constant 0 : index
    %c1 = arith.constant 1 : index
    %c0_24 = arith.constant 0 : index
    %c0_25 = arith.constant 0 : index
    %49 = vector.load %arg5[%c0_23, %c1, %c0_24, %c0_25] : memref<1x2x64x128xf32, #tpu.memory_space<vmem>>, vector<1x1x64x128xf32>
    %50 = vector.shape_cast %49 : vector<1x1x64x128xf32> to vector<64x128xf32>
    %51 = vector.shape_cast %48 : vector<64x128xf32> to vector<1x1x64x128xf32>
    tpu.vector_store %arg5[%c0_23, %c1, %c0_24, %c0_25], %51 {strides = array<i32>} : memref<1x2x64x128xf32, #tpu.memory_space<vmem>>, vector<1x1x64x128xf32>,
    return
  }
  func.func @transform_0(%arg0: i32, %arg1: i32) -> (i32, i32, i32) {
    %c0_i32 = arith.constant 0 : i32
    %c0_i32_0 = arith.constant 0 : i32
    return %arg0, %arg1, %c0_i32 : i32, i32, i32
  }
  func.func @transform_1(%arg0: i32, %arg1: i32) -> (i32, i32) {
    %c0_i32 = arith.constant 0 : i32
    %c0_i32_0 = arith.constant 0 : i32
    %c0_i32_1 = arith.constant 0 : i32
    return %c0_i32, %c0_i32_0 : i32, i32
  }
  func.func @transform_2(%arg0: i32, %arg1: i32) -> (i32, i32) {
    %c0_i32 = arith.constant 0 : i32
    %c0_i32_0 = arith.constant 0 : i32
    %c0_i32_1 = arith.constant 0 : i32
    return %c0_i32, %c0_i32_0 : i32, i32
  }
  func.func @transform_3(%arg0: i32, %arg1: i32) -> (i32, i32, i32, i32) {
    %c0_i32 = arith.constant 0 : i32
    %c0_i32_0 = arith.constant 0 : i32
    %c0_i32_1 = arith.constant 0 : i32
    return %arg0, %c0_i32, %arg1, %c0_i32_0 : i32, i32, i32, i32
  }
}

module attributes {stable_mosaic.version = 11 : i64} {
  func.func @_ln_proj_kernel(%arg0: i32, %arg1: i32, %arg2: memref<1x64x256xf32, #tpu.memory_space<vmem>>, %arg3: memref<128x128xbf16, #tpu.memory_space<vmem>>, %arg4: memref<1x128xf32, #tpu.memory_space<vmem>>, %arg5: memref<1x2x64x128xf32, #tpu.memory_space<vmem>>) attributes {dimension_semantics = [#tpu.dimension_semantics<parallel>, #tpu.dimension_semantics<parallel>], iteration_bounds = array<i64: 2, 1>, scalar_prefetch = 0 : i64, scratch_operands = 0 : i64, tpu.core_type = #tpu.core_type<tc>, window_params = [{transform_indices = @transform_0, window_bounds = array<i64: 1, 64, 256>}, {pipeline_mode = #tpu.pipeline_mode<synchronous>, transform_indices = @transform_1, window_bounds = array<i64: 128, 128>}, {pipeline_mode = #tpu.pipeline_mode<synchronous>, transform_indices = @transform_2, window_bounds = array<i64: 1, 128>}, {transform_indices = @transform_3, window_bounds = array<i64: 1, 2, 64, 128>}]} {
    %c0 = arith.constant 0 : index
    %c0_0 = arith.constant 0 : index
    %0 = vector.load %arg3[%c0, %c0_0] : memref<128x128xbf16, #tpu.memory_space<vmem>>, vector<128x128xbf16>
    %c0_1 = arith.constant 0 : index
    %c0_2 = arith.constant 0 : index
    %1 = vector.load %arg4[%c0_1, %c0_2] : memref<1x128xf32, #tpu.memory_space<vmem>>, vector<1x128xf32>
    %c0_3 = arith.constant 0 : index
    %c0_4 = arith.constant 0 : index
    %c0_5 = arith.constant 0 : index
    %2 = vector.load %arg2[%c0_3, %c0_4, %c0_5] : memref<1x64x256xf32, #tpu.memory_space<vmem>>, vector<1x64x128xf32>
    %3 = vector.shape_cast %2 : vector<1x64x128xf32> to vector<64x128xf32>
    %cst = arith.constant dense<0.000000e+00> : vector<64xf32>
    %4 = vector.multi_reduction <add>, %3, %cst [1] : vector<64x128xf32> to vector<64xf32>
    %5 = vector.shape_cast %4 : vector<64xf32> to vector<64x1xf32>
    %cst_6 = arith.constant 1.280000e+02 : f32
    %6 = vector.broadcast %cst_6 : f32 to vector<64x1xf32>
    %7 = arith.divf %5, %6 : vector<64x1xf32>
    %8 = vector.broadcast %7 : vector<64x1xf32> to vector<64x128xf32>
    %9 = arith.subf %3, %8 : vector<64x128xf32>
    %10 = arith.mulf %9, %9 : vector<64x128xf32>
    %cst_7 = arith.constant dense<0.000000e+00> : vector<64xf32>
    %11 = vector.multi_reduction <add>, %10, %cst_7 [1] : vector<64x128xf32> to vector<64xf32>
    %12 = vector.shape_cast %11 : vector<64xf32> to vector<64x1xf32>
    %cst_8 = arith.constant 1.280000e+02 : f32
    %13 = vector.broadcast %cst_8 : f32 to vector<64x1xf32>
    %14 = arith.divf %12, %13 : vector<64x1xf32>
    %cst_9 = arith.constant 9.99999974E-6 : f32
    %15 = vector.broadcast %cst_9 : f32 to vector<64x1xf32>
    %16 = arith.addf %14, %15 : vector<64x1xf32>
    %17 = math.rsqrt %16 : vector<64x1xf32>
    %18 = vector.broadcast %17 : vector<64x1xf32> to vector<64x128xf32>
    %19 = arith.mulf %9, %18 : vector<64x128xf32>
    %20 = arith.truncf %19 : vector<64x128xf32> to vector<64x128xbf16>
    %cst_10 = arith.constant dense<0.000000e+00> : vector<64x128xf32>
    %21 = tpu.matmul %20, %0, %cst_10 {dimension_numbers = #tpu.dot_dimension_numbers<[1], [0], [0], [1], [0, 0, 1, 1], [], []>} : vector<64x128xbf16>, vector<128x128xbf16>, vector<64x128xf32> -> vector<64x128xf32>
    %22 = vector.broadcast %1 : vector<1x128xf32> to vector<64x128xf32>
    %23 = arith.addf %21, %22 : vector<64x128xf32>
    %c0_11 = arith.constant 0 : index
    %c0_12 = arith.constant 0 : index
    %c0_13 = arith.constant 0 : index
    %c0_14 = arith.constant 0 : index
    %24 = vector.load %arg5[%c0_11, %c0_12, %c0_13, %c0_14] : memref<1x2x64x128xf32, #tpu.memory_space<vmem>>, vector<1x1x64x128xf32>
    %25 = vector.shape_cast %24 : vector<1x1x64x128xf32> to vector<64x128xf32>
    %26 = vector.shape_cast %23 : vector<64x128xf32> to vector<1x1x64x128xf32>
    tpu.vector_store %arg5[%c0_11, %c0_12, %c0_13, %c0_14], %26 {strides = array<i32>} : memref<1x2x64x128xf32, #tpu.memory_space<vmem>>, vector<1x1x64x128xf32>,
    %c0_15 = arith.constant 0 : index
    %c0_16 = arith.constant 0 : index
    %c128 = arith.constant 128 : index
    %27 = vector.load %arg2[%c0_15, %c0_16, %c128] : memref<1x64x256xf32, #tpu.memory_space<vmem>>, vector<1x64x128xf32>
    %28 = vector.shape_cast %27 : vector<1x64x128xf32> to vector<64x128xf32>
    %cst_17 = arith.constant dense<0.000000e+00> : vector<64xf32>
    %29 = vector.multi_reduction <add>, %28, %cst_17 [1] : vector<64x128xf32> to vector<64xf32>
    %30 = vector.shape_cast %29 : vector<64xf32> to vector<64x1xf32>
    %cst_18 = arith.constant 1.280000e+02 : f32
    %31 = vector.broadcast %cst_18 : f32 to vector<64x1xf32>
    %32 = arith.divf %30, %31 : vector<64x1xf32>
    %33 = vector.broadcast %32 : vector<64x1xf32> to vector<64x128xf32>
    %34 = arith.subf %28, %33 : vector<64x128xf32>
    %35 = arith.mulf %34, %34 : vector<64x128xf32>
    %cst_19 = arith.constant dense<0.000000e+00> : vector<64xf32>
    %36 = vector.multi_reduction <add>, %35, %cst_19 [1] : vector<64x128xf32> to vector<64xf32>
    %37 = vector.shape_cast %36 : vector<64xf32> to vector<64x1xf32>
    %cst_20 = arith.constant 1.280000e+02 : f32
    %38 = vector.broadcast %cst_20 : f32 to vector<64x1xf32>
    %39 = arith.divf %37, %38 : vector<64x1xf32>
    %cst_21 = arith.constant 9.99999974E-6 : f32
    %40 = vector.broadcast %cst_21 : f32 to vector<64x1xf32>
    %41 = arith.addf %39, %40 : vector<64x1xf32>
    %42 = math.rsqrt %41 : vector<64x1xf32>
    %43 = vector.broadcast %42 : vector<64x1xf32> to vector<64x128xf32>
    %44 = arith.mulf %34, %43 : vector<64x128xf32>
    %45 = arith.truncf %44 : vector<64x128xf32> to vector<64x128xbf16>
    %cst_22 = arith.constant dense<0.000000e+00> : vector<64x128xf32>
    %46 = tpu.matmul %45, %0, %cst_22 {dimension_numbers = #tpu.dot_dimension_numbers<[1], [0], [0], [1], [0, 0, 1, 1], [], []>} : vector<64x128xbf16>, vector<128x128xbf16>, vector<64x128xf32> -> vector<64x128xf32>
    %47 = vector.broadcast %1 : vector<1x128xf32> to vector<64x128xf32>
    %48 = arith.addf %46, %47 : vector<64x128xf32>
    %c0_23 = arith.constant 0 : index
    %c1 = arith.constant 1 : index
    %c0_24 = arith.constant 0 : index
    %c0_25 = arith.constant 0 : index
    %49 = vector.load %arg5[%c0_23, %c1, %c0_24, %c0_25] : memref<1x2x64x128xf32, #tpu.memory_space<vmem>>, vector<1x1x64x128xf32>
    %50 = vector.shape_cast %49 : vector<1x1x64x128xf32> to vector<64x128xf32>
    %51 = vector.shape_cast %48 : vector<64x128xf32> to vector<1x1x64x128xf32>
    tpu.vector_store %arg5[%c0_23, %c1, %c0_24, %c0_25], %51 {strides = array<i32>} : memref<1x2x64x128xf32, #tpu.memory_space<vmem>>, vector<1x1x64x128xf32>,
    return
  }
  func.func @transform_0(%arg0: i32, %arg1: i32) -> (i32, i32, i32) {
    %c0_i32 = arith.constant 0 : i32
    %c0_i32_0 = arith.constant 0 : i32
    return %arg0, %arg1, %c0_i32 : i32, i32, i32
  }
  func.func @transform_1(%arg0: i32, %arg1: i32) -> (i32, i32) {
    %c0_i32 = arith.constant 0 : i32
    %c0_i32_0 = arith.constant 0 : i32
    %c0_i32_1 = arith.constant 0 : i32
    return %c0_i32, %c0_i32_0 : i32, i32
  }
  func.func @transform_2(%arg0: i32, %arg1: i32) -> (i32, i32) {
    %c0_i32 = arith.constant 0 : i32
    %c0_i32_0 = arith.constant 0 : i32
    %c0_i32_1 = arith.constant 0 : i32
    return %c0_i32, %c0_i32_0 : i32, i32
  }
  func.func @transform_3(%arg0: i32, %arg1: i32) -> (i32, i32, i32, i32) {
    %c0_i32 = arith.constant 0 : i32
    %c0_i32_0 = arith.constant 0 : i32
    %c0_i32_1 = arith.constant 0 : i32
    return %arg0, %c0_i32, %arg1, %c0_i32_0 : i32, i32, i32, i32
  }
}

</mosaic_0001>

<llo_original>
// kernel: tpu_custom_call.1
$region0: #{tpu_custom_call.1}
  #allocation0 [shape = 'u32[]', space=smem, size = 0x4, offset = 0x4, fixed_abs, tag = 'smem constant byte address 0x4 - core index']
  #allocation1 [shape = 'u32[72,128]{1,0:T(1,128)}', space=vmem, size = 0x9000, scoped, tag = 'internal scratch']
  %s0 = inlined_call_operand.hbm [shape: f32[2,64,256], index: 0, kind: input, shape index: {}]
  %s1 = inlined_call_operand.hbm [shape: bf16[128,128], index: 1, kind: input, shape index: {}]
  %s2 = inlined_call_operand.vmem [shape: f32[1,128], index: 2, kind: input, shape index: {}]
  %s3 = inlined_call_operand.hbm [shape: f32[2,2,64,128], index: 3, kind: output, shape index: {}]
  %s4 = sld [smem:[#allocation0]]
  $region53: #{tpu_custom_call.1} parent=0
    _
  %s6 = ssub.s32 1, %s4
  %s7 = scalar_select 0, %s6, %s4
  $region1: #{tpu_custom_call.1} parent=0
    #allocation2 [shape = 'u8[131072]{0}', space=vmem, size = 0x20000, scoped, tag = 'input window, operand 0']
    #allocation3 [shape = 's32[2]{0}', space=sflag, size = 0x8, scoped, tag = 'scoped memory for tpu_custom_call.1']
    #allocation4 [shape = 's32[2]{0}', space=sflag, size = 0x8, scoped, tag = 'scoped memory for tpu_custom_call.1']
    #allocation5 [shape = 'u8[32768]{0}', space=vmem, size = 0x8000, scoped, tag = 'input window, operand 1, single buffered']
    #allocation6 [shape = 's32[1]{0}', space=sflag, size = 0x4, scoped, tag = 'scoped memory for tpu_custom_call.1']
    #allocation7 [shape = 'u8[131072]{0}', space=vmem, size = 0x20000, scoped, tag = 'output window, operand 0']
    %8 = vsyncpa [#allocation3], 0
    %s9 = scalar_lea.sflag [#allocation3], 1
    %10 = vsyncpa %s9, 0
    %11 = vsyncpa [#allocation6], 0
    %12 = vsyncpa [#allocation4], 0
    %s13 = scalar_lea.sflag [#allocation4], 1
    %14 = vsyncpa %s13, 0
    loop: start=0, step=1, limit=4
    $region2: #{tpu_custom_call.1} parent=1 // loop_pre_header
      _
    $region3: #{tpu_custom_call.1} parent=1 // loop_header
      %s16 = sphi 0, %s20
      %p17 = scmp.ge.s32.totalorder %s16, 4
      %s23 = sphi 0, %s35
      %s24 = sphi 0, %s31
      %s25 = sphi 0, %s23
      %s26 = sphi 0, %s24
      %s27 = sphi 0, %s25
      %s28 = sphi 0, %s26
      %s40 = sphi 0, %s42
      %s43 = sphi 0, %s40
      %s44 = sphi 0, %s43
      %s60 = sphi 0, %s44
      %s64 = sphi 0, %s64
      %s66 = sphi 0, %s64
      %s67 = sphi 0, %s66
      %s81 = sphi 0, %s67
      %s85 = sphi 0, %s85
      %s87 = sphi 0, %s85
      %s88 = sphi 0, %s87
      %s102 = sphi 0, %s88
      %s110 = sphi 0, %s112
      %s113 = sphi 0, %s110
      %s114 = sphi 0, %s113
      %s130 = sphi 0, %s114
    $region4: #{tpu_custom_call.1} parent=1 // loop_header_branch
      %19 = sbr.rel (%p17) target = $region8
    $region5: #{tpu_custom_call.1} parent=1 // loop_body
      %s21 = ssub.s32 %s16, 1
      %s22 = ssub.s32 %s16, 2
      %s29 = sadd.s32 1, %s24
      %p30 = scmp.ge.s32.totalorder %s29, 1
      %s31 = scalar_select %p30, 0, %s29
      %s32 = sadd.s32 1, %s23
      %s33 = scalar_select %p30, %s32, %s23
      %p34 = scmp.ge.s32.totalorder %s33, 2
      %s35 = scalar_select %p34, 0, %s33
      %s36 = ssub.s32 %s23, %s35
      %s37 = ssub.s32 %s24, %s31
      %s38 = sor.u32 %s36, %s37
      %p39 = scmp.eq.s32.totalorder %s38, 0
      %s41 = sadd.s32 %s40, 1
      %s42 = scalar_select %p39, %s40, %s41
      %p45 = pneg %p39
      %p46 = scmp.eq.s32.totalorder %s16, 1
      %p47 = por %p45, %p46
      %p48 = scmp.ne.s32.totalorder %s40, %s43
      %p49 = scmp.eq.s32.totalorder %s16, 0
      %p50 = por %p48, %p49
      %p51 = scmp.ne.s32.totalorder %s40, %s43
      %p52 = scmp.eq.s32.totalorder %s21, 1
      %p53 = por %p51, %p52
      %p54 = scmp.ne.s32.totalorder %s43, %s44
      %p55 = scmp.eq.s32.totalorder %s21, 0
      %p56 = por %p54, %p55
      %p57 = scmp.ne.s32.totalorder %s43, %s44
      %p58 = scmp.eq.s32.totalorder %s22, 1
      %p59 = por %p57, %p58
      %p61 = scmp.ne.s32.totalorder %s44, %s60
      %p62 = scmp.eq.s32.totalorder %s22, 0
      %p63 = por %p61, %p62
      %s65 = sadd.s32 %s64, 1
      %p68 = scmp.eq.s32.totalorder %s16, 1
      %p69 = scmp.ne.s32.totalorder %s64, %s66
      %p70 = scmp.eq.s32.totalorder %s16, 0
      %p71 = por %p69, %p70
      %p72 = scmp.ne.s32.totalorder %s64, %s66
      %p73 = scmp.eq.s32.totalorder %s21, 1
      %p74 = por %p72, %p73
      %p75 = scmp.ne.s32.totalorder %s66, %s67
      %p76 = scmp.eq.s32.totalorder %s21, 0
      %p77 = por %p75, %p76
      %p78 = scmp.ne.s32.totalorder %s66, %s67
      %p79 = scmp.eq.s32.totalorder %s22, 1
      %p80 = por %p78, %p79
      %p82 = scmp.ne.s32.totalorder %s67, %s81
      %p83 = scmp.eq.s32.totalorder %s22, 0
      %p84 = por %p82, %p83
      %s86 = sadd.s32 %s85, 1
      %p89 = scmp.eq.s32.totalorder %s16, 1
      %p90 = scmp.ne.s32.totalorder %s85, %s87
      %p91 = scmp.eq.s32.totalorder %s16, 0
      %p92 = por %p90, %p91
      %p93 = scmp.ne.s32.totalorder %s85, %s87
      %p94 = scmp.eq.s32.totalorder %s21, 1
      %p95 = por %p93, %p94
      %p96 = scmp.ne.s32.totalorder %s87, %s88
      %p97 = scmp.eq.s32.totalorder %s21, 0
      %p98 = por %p96, %p97
      %p99 = scmp.ne.s32.totalorder %s87, %s88
      %p100 = scmp.eq.s32.totalorder %s22, 1
      %p101 = por %p99, %p100
      %p103 = scmp.ne.s32.totalorder %s88, %s102
      %p104 = scmp.eq.s32.totalorder %s22, 0
      %p105 = por %p103, %p104
      %s106 = ssub.s32 %s23, %s35
      %s107 = ssub.s32 %s24, %s31
      %s108 = sor.u32 %s106, %s107
      %p109 = scmp.eq.s32.totalorder %s108, 0
      %s111 = sadd.s32 %s110, 1
      %s112 = scalar_select %p109, %s110, %s111
      %p115 = pneg %p109
      %p116 = scmp.eq.s32.totalorder %s16, 1
      %p117 = por %p115, %p116
      %p118 = scmp.ne.s32.totalorder %s110, %s113
      %p119 = scmp.eq.s32.totalorder %s16, 0
      %p120 = por %p118, %p119
      %p121 = scmp.ne.s32.totalorder %s110, %s113
      %p122 = scmp.eq.s32.totalorder %s21, 1
      %p123 = por %p121, %p122
      %p124 = scmp.ne.s32.totalorder %s113, %s114
      %p125 = scmp.eq.s32.totalorder %s21, 0
      %p126 = por %p124, %p125
      %p127 = scmp.ne.s32.totalorder %s113, %s114
      %p128 = scmp.eq.s32.totalorder %s22, 1
      %p129 = por %p127, %p128
      %p131 = scmp.ne.s32.totalorder %s114, %s130
      %p132 = scmp.eq.s32.totalorder %s22, 0
      %p133 = por %p131, %p132
      %p134 = scmp.le.s32.totalorder 1, %s16
      %p135 = scmp.lt.s32.totalorder %s16, 3
      %p136 = pnand %p134, %p135
      %p137 = pneg %p136
      // Predicated region
      $region9: #{tpu_custom_call.1} parent=5 // pred_check
        _
      $region10: #{tpu_custom_call.1} parent=5 // pred_check_branch
        %139 = sbr.rel (%p136) target = $region12
      $region11: #{tpu_custom_call.1} parent=5 // pred_region
        %s140 = ssub.s32 %s16, 1
        // Predicated region
        $region13: #{tpu_custom_call.1} parent=11 // pred_check
          %p141 = pneg %p77
        $region14: #{tpu_custom_call.1} parent=11 // pred_check_branch
          %143 = sbr.rel (%p141) target = $region16
        $region15: #{tpu_custom_call.1} parent=11 // pred_region
          %145 = vsyncadd [#allocation6], 0
          %s146 = sshll.u32 %s1, 4
          %s147 = int_to_ptr.hbm [resolvable:$true] %s146
          %s148 = sshll.u32 [#allocation5], 4
          %s149 = int_to_ptr.vmem [resolvable:$true] %s148
          %154 = dma.hbm_to_vmem [thread:$0]  %s147, 1024, %s149, [#allocation6], 64, 64, 4
        $region16: #{tpu_custom_call.1} parent=11 // pred_fallthru
          _
        // Predicated region
        $region17: #{tpu_custom_call.1} parent=11 // pred_check
          %p155 = pneg %p98
        $region18: #{tpu_custom_call.1} parent=11 // pred_check_branch
          %157 = sbr.rel (%p155) target = $region20
        $region19: #{tpu_custom_call.1} parent=11 // pred_region
          _
        $region20: #{tpu_custom_call.1} parent=11 // pred_fallthru
          _
      $region12: #{tpu_custom_call.1} parent=5 // pred_fallthru
        _
      %p158 = scmp.lt.s32.totalorder %s16, 2
      // Predicated region
      $region21: #{tpu_custom_call.1} parent=5 // pred_check
        %p159 = pneg %p158
      $region22: #{tpu_custom_call.1} parent=5 // pred_check_branch
        %161 = sbr.rel (%p159) target = $region24
      $region23: #{tpu_custom_call.1} parent=5 // pred_region
        // Predicated region
        $region25: #{tpu_custom_call.1} parent=23 // pred_check
          %p162 = pneg %p50
        $region26: #{tpu_custom_call.1} parent=23 // pred_check_branch
          %164 = sbr.rel (%p162) target = $region28
        $region27: #{tpu_custom_call.1} parent=23 // pred_region
          %s165 = sand.u32 %s40, 1
          %s166 = scalar_lea.sflag [#allocation3], %s165
          %s167 = sand.u32 %s40, 1
          %s168 = smul.addr %s167, 128
          %s169 = scalar_lea.vmem [#allocation2], %s168
          %s170 = smul.u32 8, %s24
          %172 = vsyncadd %s166, 0
          %s173 = smul.addr %s170, 2
          %s174 = smul.addr %s23, 16
          %s175 = sadd.s32 %s173, %s174
          %s176 = smul.addr %s175, 8
          %s177 = scalar_lea.hbm %s0, %s176
          %s178 = sshll.u32 %s177, 4
          %s179 = int_to_ptr.hbm [resolvable:$true] %s178
          %s180 = sshll.u32 %s169, 4
          %s181 = int_to_ptr.vmem [resolvable:$true] %s180
          %186 = dma.hbm_to_vmem [thread:$0]  %s179, 2048, %s181, %s166, 256, 256, 16
        $region28: #{tpu_custom_call.1} parent=23 // pred_fallthru
          _
      $region24: #{tpu_custom_call.1} parent=5 // pred_fallthru
        _
      %p187 = scmp.le.s32.totalorder 1, %s16
      %p188 = scmp.lt.s32.totalorder %s16, 3
      %p189 = pnand %p187, %p188
      %p190 = pneg %p189
      // Predicated region
      $region29: #{tpu_custom_call.1} parent=5 // pred_check
        _
      $region30: #{tpu_custom_call.1} parent=5 // pred_check_branch
        %192 = sbr.rel (%p189) target = $region32
      $region31: #{tpu_custom_call.1} parent=5 // pred_region
        %s193 = ssub.s32 %s16, 1
        %s194 = sand.u32 %s43, 1
        %s195 = scalar_lea.sflag [#allocation3], %s194
        %s196 = sand.u32 %s43, 1
        %s197 = smul.addr %s196, 128
        %s198 = scalar_lea.vmem [#allocation2], %s197
        // Predicated region
        $region33: #{tpu_custom_call.1} parent=31 // pred_check
          %p199 = pneg %p56
        $region34: #{tpu_custom_call.1} parent=31 // pred_check_branch
          %201 = sbr.rel (%p199) target = $region36
        $region35: #{tpu_custom_call.1} parent=31 // pred_region
          %203 = dma.done %s195, 2048
        $region36: #{tpu_custom_call.1} parent=31 // pred_fallthru
          _
        // Predicated region
        $region37: #{tpu_custom_call.1} parent=31 // pred_check
          %p204 = pneg %p77
        $region38: #{tpu_custom_call.1} parent=31 // pred_check_branch
          %206 = sbr.rel (%p204) target = $region40
        $region39: #{tpu_custom_call.1} parent=31 // pred_region
          %208 = dma.done [#allocation6], 1024
        $region40: #{tpu_custom_call.1} parent=31 // pred_fallthru
          _
        %s209 = sand.u32 %s43, 1
        %s210 = scalar_lea.sflag [#allocation3], %s209
        %s211 = sand.u32 %s43, 1
        %s212 = smul.addr %s211, 128
        %s213 = scalar_lea.vmem [#allocation2], %s212
        %p214 = pneg %p56
        %p215 = pneg %p53
        %p216 = pneg %p77
        %p217 = pneg %p74
        %p218 = pneg %p98
        %p219 = pneg %p95
        %p220 = pneg %p126
        %p221 = pneg %p123
        %s222 = sand.u32 %s113, 1
        %s223 = scalar_lea.sflag [#allocation4], %s222
        %s224 = sand.u32 %s113, 1
        %s225 = smul.addr %s224, 128
        %s226 = scalar_lea.vmem [#allocation7], %s225
        %s227 = smul.u32 8, %s26
        %s228 = smul.u32 8, %s26
        %v229 = vld [vmem:[#allocation5] sm:$0xf]
        %v230 = vld [vmem:[#allocation5 + $0x4] sm:$0xf]
        %v231 = vld [vmem:[#allocation5 + $0x8] sm:$0xf]
        %v232 = vld [vmem:[#allocation5 + $0xc] sm:$0xf]
        %v233 = vld [vmem:[#allocation5 + $0x10] sm:$0xf]
        %v234 = vld [vmem:[#allocation5 + $0x14] sm:$0xf]
        %v235 = vld [vmem:[#allocation5 + $0x18] sm:$0xf]
        %v236 = vld [vmem:[#allocation5 + $0x1c] sm:$0xf]
        %v237 = vld [vmem:[#allocation5 + $0x20] sm:$0xf]
        %v238 = vld [vmem:[#allocation5 + $0x24] sm:$0xf]
        %v239 = vld [vmem:[#allocation5 + $0x28] sm:$0xf]
        %v240 = vld [vmem:[#allocation5 + $0x2c] sm:$0xf]
        %v241 = vld [vmem:[#allocation5 + $0x30] sm:$0xf]
        %v242 = vld [vmem:[#allocation5 + $0x34] sm:$0xf]
        %v243 = vld [vmem:[#allocation5 + $0x38] sm:$0xf]
        %v244 = vld [vmem:[#allocation5 + $0x3c] sm:$0xf]
        %v245 = vld [vmem:[%s2] sm:$0x1]
        %v246 = vld [vmem:[%s198] sm:$0xff]
        %v247 = vld [vmem:[%s198 + $0x10] sm:$0xff]
        %v248 = vld [vmem:[%s198 + $0x20] sm:$0xff]
        %v249 = vld [vmem:[%s198 + $0x30] sm:$0xff]
        %v250 = vld [vmem:[%s198 + $0x40] sm:$0xff]
        %v251 = vld [vmem:[%s198 + $0x50] sm:$0xff]
        %v252 = vld [vmem:[%s198 + $0x60] sm:$0xff]
        %v253 = vld [vmem:[%s198 + $0x70] sm:$0xff]
        %254 = vadd.xlane.f32.xlu0 %v246
        %v255 = vpop.xlane.xlu0 %254
        %256 = vadd.xlane.f32.xlu0 %v247
        %v257 = vpop.xlane.xlu0 %256
        %258 = vadd.xlane.f32.xlu0 %v248
        %v259 = vpop.xlane.xlu0 %258
        %260 = vadd.xlane.f32.xlu0 %v249
        %v261 = vpop.xlane.xlu0 %260
        %262 = vadd.xlane.f32.xlu0 %v250
        %v263 = vpop.xlane.xlu0 %262
        %264 = vadd.xlane.f32.xlu0 %v251
        %v265 = vpop.xlane.xlu0 %264
        %266 = vadd.xlane.f32.xlu0 %v252
        %v267 = vpop.xlane.xlu0 %266
        %268 = vadd.xlane.f32.xlu0 %v253
        %v269 = vpop.xlane.xlu0 %268
        %v270 = vrcp.pop 128.0
        %v271 = vmul.f32 128.0, %v270
        %v272 = vsub.f32 1.0, %v271
        %v273 = vmul.f32 %v270, %v272
        %v274 = vadd.f32 %v270, %v273
        %vm275 = vweird.f32 %v270
        %v276 = vsel %vm275, %v270, %v274
        %v277 = vmul.f32 %v255, %v276
        %v278 = vmul.f32 %v257, %v276
        %v279 = vmul.f32 %v259, %v276
        %v280 = vmul.f32 %v261, %v276
        %v281 = vmul.f32 %v263, %v276
        %v282 = vmul.f32 %v265, %v276
        %v283 = vmul.f32 %v267, %v276
        %v284 = vmul.f32 %v269, %v276
        %v285 = vsub.f32 %v246, %v277
        %v286 = vsub.f32 %v247, %v278
        %v287 = vsub.f32 %v248, %v279
        %v288 = vsub.f32 %v249, %v280
        %v289 = vsub.f32 %v250, %v281
        %v290 = vsub.f32 %v251, %v282
        %v291 = vsub.f32 %v252, %v283
        %v292 = vsub.f32 %v253, %v284
        %v293 = vmul.f32 %v285, %v285
        %v294 = vmul.f32 %v286, %v286
        %v295 = vmul.f32 %v287, %v287
        %v296 = vmul.f32 %v288, %v288
        %v297 = vmul.f32 %v289, %v289
        %v298 = vmul.f32 %v290, %v290
        %v299 = vmul.f32 %v291, %v291
        %v300 = vmul.f32 %v292, %v292
        %301 = vadd.xlane.f32.xlu0 %v293
        %v302 = vpop.xlane.xlu0 %301
        %303 = vadd.xlane.f32.xlu0 %v294
        %v304 = vpop.xlane.xlu0 %303
        %305 = vadd.xlane.f32.xlu0 %v295
        %v306 = vpop.xlane.xlu0 %305
        %307 = vadd.xlane.f32.xlu0 %v296
        %v308 = vpop.xlane.xlu0 %307
        %309 = vadd.xlane.f32.xlu0 %v297
        %v310 = vpop.xlane.xlu0 %309
        %311 = vadd.xlane.f32.xlu0 %v298
        %v312 = vpop.xlane.xlu0 %311
        %313 = vadd.xlane.f32.xlu0 %v299
        %v314 = vpop.xlane.xlu0 %313
        %315 = vadd.xlane.f32.xlu0 %v300
        %v316 = vpop.xlane.xlu0 %315
        %v317 = vmul.f32 %v302, %v276
        %v318 = vmul.f32 %v304, %v276
        %v319 = vmul.f32 %v306, %v276
        %v320 = vmul.f32 %v308, %v276
        %v321 = vmul.f32 %v310, %v276
        %v322 = vmul.f32 %v312, %v276
        %v323 = vmul.f32 %v314, %v276
        %v324 = vmul.f32 %v316, %v276
        %v325 = vadd.f32 %v317, 1e-05
        %v326 = vadd.f32 %v318, 1e-05
        %v327 = vadd.f32 %v319, 1e-05
        %v328 = vadd.f32 %v320, 1e-05
        %v329 = vadd.f32 %v321, 1e-05
        %v330 = vadd.f32 %v322, 1e-05
        %v331 = vadd.f32 %v323, 1e-05
        %v332 = vadd.f32 %v324, 1e-05
        %v333 = vrsqrt.pop %v325
        %v334 = vmul.f32 %v333, %v325
        %v335 = vmul.f32 %v334, %v333
        %v336 = vmul.f32 0.5, %v335
        %v337 = vsub.f32 1.5, %v336
        %v338 = vmul.f32 %v333, %v337
        %vm339 = vweird.f32 %v325
        %vm340 = vweird.f32 %v333
        %vm341 = vmor %vm339, %vm340
        %v342 = vsel %vm341, %v333, %v338
        %v343 = vrsqrt.pop %v326
        %v344 = vmul.f32 %v343, %v326
        %v345 = vmul.f32 %v344, %v343
        %v346 = vmul.f32 0.5, %v345
        %v347 = vsub.f32 1.5, %v346
        %v348 = vmul.f32 %v343, %v347
        %vm349 = vweird.f32 %v326
        %vm350 = vweird.f32 %v343
        %vm351 = vmor %vm349, %vm350
        %v352 = vsel %vm351, %v343, %v348
        %v353 = vrsqrt.pop %v327
        %v354 = vmul.f32 %v353, %v327
        %v355 = vmul.f32 %v354, %v353
        %v356 = vmul.f32 0.5, %v355
        %v357 = vsub.f32 1.5, %v356
        %v358 = vmul.f32 %v353, %v357
        %vm359 = vweird.f32 %v327
        %vm360 = vweird.f32 %v353
        %vm361 = vmor %vm359, %vm360
        %v362 = vsel %vm361, %v353, %v358
        %v363 = vrsqrt.pop %v328
        %v364 = vmul.f32 %v363, %v328
        %v365 = vmul.f32 %v364, %v363
        %v366 = vmul.f32 0.5, %v365
        %v367 = vsub.f32 1.5, %v366
        %v368 = vmul.f32 %v363, %v367
        %vm369 = vweird.f32 %v328
        %vm370 = vweird.f32 %v363
        %vm371 = vmor %vm369, %vm370
        %v372 = vsel %vm371, %v363, %v368
        %v373 = vrsqrt.pop %v329
        %v374 = vmul.f32 %v373, %v329
        %v375 = vmul.f32 %v374, %v373
        %v376 = vmul.f32 0.5, %v375
        %v377 = vsub.f32 1.5, %v376
        %v378 = vmul.f32 %v373, %v377
        %vm379 = vweird.f32 %v329
        %vm380 = vweird.f32 %v373
        %vm381 = vmor %vm379, %vm380
        %v382 = vsel %vm381, %v373, %v378
        %v383 = vrsqrt.pop %v330
        %v384 = vmul.f32 %v383, %v330
        %v385 = vmul.f32 %v384, %v383
        %v386 = vmul.f32 0.5, %v385
        %v387 = vsub.f32 1.5, %v386
        %v388 = vmul.f32 %v383, %v387
        %vm389 = vweird.f32 %v330
        %vm390 = vweird.f32 %v383
        %vm391 = vmor %vm389, %vm390
        %v392 = vsel %vm391, %v383, %v388
        %v393 = vrsqrt.pop %v331
        %v394 = vmul.f32 %v393, %v331
        %v395 = vmul.f32 %v394, %v393
        %v396 = vmul.f32 0.5, %v395
        %v397 = vsub.f32 1.5, %v396
        %v398 = vmul.f32 %v393, %v397
        %vm399 = vweird.f32 %v331
        %vm400 = vweird.f32 %v393
        %vm401 = vmor %vm399, %vm400
        %v402 = vsel %vm401, %v393, %v398
        %v403 = vrsqrt.pop %v332
        %v404 = vmul.f32 %v403, %v332
        %v405 = vmul.f32 %v404, %v403
        %v406 = vmul.f32 0.5, %v405
        %v407 = vsub.f32 1.5, %v406
        %v408 = vmul.f32 %v403, %v407
        %vm409 = vweird.f32 %v332
        %vm410 = vweird.f32 %v403
        %vm411 = vmor %vm409, %vm410
        %v412 = vsel %vm411, %v403, %v408
        %v413 = vmul.f32 %v285, %v342
        %v414 = vmul.f32 %v286, %v352
        %v415 = vmul.f32 %v287, %v362
        %v416 = vmul.f32 %v288, %v372
        %v417 = vmul.f32 %v289, %v382
        %v418 = vmul.f32 %v290, %v392
        %v419 = vmul.f32 %v291, %v402
        %v420 = vmul.f32 %v292, %v412
        %v421 = vpack.c.bf16 %v414, %v413
        %v422 = vpack.c.bf16 %v416, %v415
        %v423 = vpack.c.bf16 %v418, %v417
        %v424 = vpack.c.bf16 %v420, %v419
        %v426 = vperm.slane %v245, 0
        %v444 = vunpack.c.l.b16 %v229
        %v445 = vunpack.c.l.b16 %v230
        %v446 = vunpack.c.l.b16 %v231
        %v447 = vunpack.c.l.b16 %v232
        %v448 = vunpack.c.l.b16 %v233
        %v449 = vunpack.c.l.b16 %v234
        %v450 = vunpack.c.l.b16 %v235
        %v451 = vunpack.c.l.b16 %v236
        %v452 = vunpack.c.l.b16 %v237
        %v453 = vunpack.c.l.b16 %v238
        %v454 = vunpack.c.l.b16 %v239
        %v455 = vunpack.c.l.b16 %v240
        %v456 = vunpack.c.l.b16 %v241
        %v457 = vunpack.c.l.b16 %v242
        %v458 = vunpack.c.l.b16 %v243
        %v459 = vunpack.c.l.b16 %v244
        %v460 = vpack.c.b16 %v445, %v444
        %v461 = vpack.c.b16 %v447, %v446
        %v462 = vpack.c.b16 %v449, %v448
        %v463 = vpack.c.b16 %v451, %v450
        %v464 = vpack.c.b16 %v453, %v452
        %v465 = vpack.c.b16 %v455, %v454
        %v466 = vpack.c.b16 %v457, %v456
        %v467 = vpack.c.b16 %v459, %v458
        %476 = vmatpush.bf16.msra.mxu0 %v467
        %477 = vmatpush.bf16.msra.mxu0 %v466
        %478 = vmatpush.bf16.msra.mxu0 %v465
        %479 = vmatpush.bf16.msra.mxu0 %v464
        %480 = vmatpush.bf16.msra.mxu0 %v463
        %481 = vmatpush.bf16.msra.mxu0 %v462
        %482 = vmatpush.bf16.msra.mxu0 %v461
        %483 = vmatpush.bf16.msra.mxu0 %v460
        %484 = vmatmul.bf16.gmra.mxu0 %v421
        %v485 = vpop.f32.mrf.mxu0
        %v486 = vadd.f32 %v426, %v485
        %v487 = vpop.f32.mrf.mxu0
        %v488 = vadd.f32 %v426, %v487
        %489 = vmatmul.bf16.gmra.mxu0 %v422
        %v490 = vpop.f32.mrf.mxu0
        %v491 = vadd.f32 %v426, %v490
        %v492 = vpop.f32.mrf.mxu0
        %v493 = vadd.f32 %v426, %v492
        %494 = vmatmul.bf16.gmra.mxu0 %v423
        %v495 = vpop.f32.mrf.mxu0
        %v496 = vadd.f32 %v426, %v495
        %v497 = vpop.f32.mrf.mxu0
        %v498 = vadd.f32 %v426, %v497
        %499 = vmatmul.bf16.gmra.mxu0 %v424
        %v500 = vpop.f32.mrf.mxu0
        %v501 = vadd.f32 %v426, %v500
        %v502 = vpop.f32.mrf.mxu0
        %v503 = vadd.f32 %v426, %v502
        %504 = vdwg.mxu0
        %505 = vst [vmem:[%s226] sm:$0xff] %v486
        %506 = vst [vmem:[%s226 + $0x8] sm:$0xff] %v488
        %507 = vst [vmem:[%s226 + $0x10] sm:$0xff] %v491
        %508 = vst [vmem:[%s226 + $0x18] sm:$0xff] %v493
        %509 = vst [vmem:[%s226 + $0x20] sm:$0xff] %v496
        %510 = vst [vmem:[%s226 + $0x28] sm:$0xff] %v498
        %511 = vst [vmem:[%s226 + $0x30] sm:$0xff] %v501
        %512 = vst [vmem:[%s226 + $0x38] sm:$0xff] %v503
        %v513 = vld [vmem:[%s198 + $0x8] sm:$0xff]
        %v514 = vld [vmem:[%s198 + $0x18] sm:$0xff]
        %v515 = vld [vmem:[%s198 + $0x28] sm:$0xff]
        %v516 = vld [vmem:[%s198 + $0x38] sm:$0xff]
        %v517 = vld [vmem:[%s198 + $0x48] sm:$0xff]
        %v518 = vld [vmem:[%s198 + $0x58] sm:$0xff]
        %v519 = vld [vmem:[%s198 + $0x68] sm:$0xff]
        %v520 = vld [vmem:[%s198 + $0x78] sm:$0xff]
        %521 = vadd.xlane.f32.xlu0 %v513
        %v522 = vpop.xlane.xlu0 %521
        %523 = vadd.xlane.f32.xlu0 %v514
        %v524 = vpop.xlane.xlu0 %523
        %525 = vadd.xlane.f32.xlu0 %v515
        %v526 = vpop.xlane.xlu0 %525
        %527 = vadd.xlane.f32.xlu0 %v516
        %v528 = vpop.xlane.xlu0 %527
        %529 = vadd.xlane.f32.xlu0 %v517
        %v530 = vpop.xlane.xlu0 %529
        %531 = vadd.xlane.f32.xlu0 %v518
        %v532 = vpop.xlane.xlu0 %531
        %533 = vadd.xlane.f32.xlu0 %v519
        %v534 = vpop.xlane.xlu0 %533
        %535 = vadd.xlane.f32.xlu0 %v520
        %v536 = vpop.xlane.xlu0 %535
        %v537 = vmul.f32 %v522, %v276
        %v538 = vmul.f32 %v524, %v276
        %v539 = vmul.f32 %v526, %v276
        %v540 = vmul.f32 %v528, %v276
        %v541 = vmul.f32 %v530, %v276
        %v542 = vmul.f32 %v532, %v276
        %v543 = vmul.f32 %v534, %v276
        %v544 = vmul.f32 %v536, %v276
        %v545 = vsub.f32 %v513, %v537
        %v546 = vsub.f32 %v514, %v538
        %v547 = vsub.f32 %v515, %v539
        %v548 = vsub.f32 %v516, %v540
        %v549 = vsub.f32 %v517, %v541
        %v550 = vsub.f32 %v518, %v542
        %v551 = vsub.f32 %v519, %v543
        %v552 = vsub.f32 %v520, %v544
        %v553 = vmul.f32 %v545, %v545
        %v554 = vmul.f32 %v546, %v546
        %v555 = vmul.f32 %v547, %v547
        %v556 = vmul.f32 %v548, %v548
        %v557 = vmul.f32 %v549, %v549
        %v558 = vmul.f32 %v550, %v550
        %v559 = vmul.f32 %v551, %v551
        %v560 = vmul.f32 %v552, %v552
        %561 = vadd.xlane.f32.xlu0 %v553
        %v562 = vpop.xlane.xlu0 %561
        %563 = vadd.xlane.f32.xlu0 %v554
        %v564 = vpop.xlane.xlu0 %563
        %565 = vadd.xlane.f32.xlu0 %v555
        %v566 = vpop.xlane.xlu0 %565
        %567 = vadd.xlane.f32.xlu0 %v556
        %v568 = vpop.xlane.xlu0 %567
        %569 = vadd.xlane.f32.xlu0 %v557
        %v570 = vpop.xlane.xlu0 %569
        %571 = vadd.xlane.f32.xlu0 %v558
        %v572 = vpop.xlane.xlu0 %571
        %573 = vadd.xlane.f32.xlu0 %v559
        %v574 = vpop.xlane.xlu0 %573
        %575 = vadd.xlane.f32.xlu0 %v560
        %v576 = vpop.xlane.xlu0 %575
        %v577 = vmul.f32 %v562, %v276
        %v578 = vmul.f32 %v564, %v276
        %v579 = vmul.f32 %v566, %v276
        %v580 = vmul.f32 %v568, %v276
        %v581 = vmul.f32 %v570, %v276
        %v582 = vmul.f32 %v572, %v276
        %v583 = vmul.f32 %v574, %v276
        %v584 = vmul.f32 %v576, %v276
        %v585 = vadd.f32 %v577, 1e-05
        %v586 = vadd.f32 %v578, 1e-05
        %v587 = vadd.f32 %v579, 1e-05
        %v588 = vadd.f32 %v580, 1e-05
        %v589 = vadd.f32 %v581, 1e-05
        %v590 = vadd.f32 %v582, 1e-05
        %v591 = vadd.f32 %v583, 1e-05
        %v592 = vadd.f32 %v584, 1e-05
        %v593 = vrsqrt.pop %v585
        %v594 = vmul.f32 %v593, %v585
        %v595 = vmul.f32 %v594, %v593
        %v596 = vmul.f32 0.5, %v595
        %v597 = vsub.f32 1.5, %v596
        %v598 = vmul.f32 %v593, %v597
        %vm599 = vweird.f32 %v585
        %vm600 = vweird.f32 %v593
        %vm601 = vmor %vm599, %vm600
        %v602 = vsel %vm601, %v593, %v598
        %v603 = vrsqrt.pop %v586
        %v604 = vmul.f32 %v603, %v586
        %v605 = vmul.f32 %v604, %v603
        %v606 = vmul.f32 0.5, %v605
        %v607 = vsub.f32 1.5, %v606
        %v608 = vmul.f32 %v603, %v607
        %vm609 = vweird.f32 %v586
        %vm610 = vweird.f32 %v603
        %vm611 = vmor %vm609, %vm610
        %v612 = vsel %vm611, %v603, %v608
        %v613 = vrsqrt.pop %v587
        %v614 = vmul.f32 %v613, %v587
        %v615 = vmul.f32 %v614, %v613
        %v616 = vmul.f32 0.5, %v615
        %v617 = vsub.f32 1.5, %v616
        %v618 = vmul.f32 %v613, %v617
        %vm619 = vweird.f32 %v587
        %vm620 = vweird.f32 %v613
        %vm621 = vmor %vm619, %vm620
        %v622 = vsel %vm621, %v613, %v618
        %v623 = vrsqrt.pop %v588
        %v624 = vmul.f32 %v623, %v588
        %v625 = vmul.f32 %v624, %v623
        %v626 = vmul.f32 0.5, %v625
        %v627 = vsub.f32 1.5, %v626
        %v628 = vmul.f32 %v623, %v627
        %vm629 = vweird.f32 %v588
        %vm630 = vweird.f32 %v623
        %vm631 = vmor %vm629, %vm630
        %v632 = vsel %vm631, %v623, %v628
        %v633 = vrsqrt.pop %v589
        %v634 = vmul.f32 %v633, %v589
        %v635 = vmul.f32 %v634, %v633
        %v636 = vmul.f32 0.5, %v635
        %v637 = vsub.f32 1.5, %v636
        %v638 = vmul.f32 %v633, %v637
        %vm639 = vweird.f32 %v589
        %vm640 = vweird.f32 %v633
        %vm641 = vmor %vm639, %vm640
        %v642 = vsel %vm641, %v633, %v638
        %v643 = vrsqrt.pop %v590
        %v644 = vmul.f32 %v643, %v590
        %v645 = vmul.f32 %v644, %v643
        %v646 = vmul.f32 0.5, %v645
        %v647 = vsub.f32 1.5, %v646
        %v648 = vmul.f32 %v643, %v647
        %vm649 = vweird.f32 %v590
        %vm650 = vweird.f32 %v643
        %vm651 = vmor %vm649, %vm650
        %v652 = vsel %vm651, %v643, %v648
        %v653 = vrsqrt.pop %v591
        %v654 = vmul.f32 %v653, %v591
        %v655 = vmul.f32 %v654, %v653
        %v656 = vmul.f32 0.5, %v655
        %v657 = vsub.f32 1.5, %v656
        %v658 = vmul.f32 %v653, %v657
        %vm659 = vweird.f32 %v591
        %vm660 = vweird.f32 %v653
        %vm661 = vmor %vm659, %vm660
        %v662 = vsel %vm661, %v653, %v658
        %v663 = vrsqrt.pop %v592
        %v664 = vmul.f32 %v663, %v592
        %v665 = vmul.f32 %v664, %v663
        %v666 = vmul.f32 0.5, %v665
        %v667 = vsub.f32 1.5, %v666
        %v668 = vmul.f32 %v663, %v667
        %vm669 = vweird.f32 %v592
        %vm670 = vweird.f32 %v663
        %vm671 = vmor %vm669, %vm670
        %v672 = vsel %vm671, %v663, %v668
        %v673 = vmul.f32 %v545, %v602
        %v674 = vmul.f32 %v546, %v612
        %v675 = vmul.f32 %v547, %v622
        %v676 = vmul.f32 %v548, %v632
        %v677 = vmul.f32 %v549, %v642
        %v678 = vmul.f32 %v550, %v652
        %v679 = vmul.f32 %v551, %v662
        %v680 = vmul.f32 %v552, %v672
        %v681 = vpack.c.bf16 %v674, %v673
        %v682 = vpack.c.bf16 %v676, %v675
        %v683 = vpack.c.bf16 %v678, %v677
        %v684 = vpack.c.bf16 %v680, %v679
        %685 = vmatpush.bf16.msra.mxu0 %v467
        %686 = vmatpush.bf16.msra.mxu0 %v466
        %687 = vmatpush.bf16.msra.mxu0 %v465
        %688 = vmatpush.bf16.msra.mxu0 %v464
        %689 = vmatpush.bf16.msra.mxu0 %v463
        %690 = vmatpush.bf16.msra.mxu0 %v462
        %691 = vmatpush.bf16.msra.mxu0 %v461
        %692 = vmatpush.bf16.msra.mxu0 %v460
        %693 = vmatmul.bf16.gmra.mxu0 %v681
        %v694 = vpop.f32.mrf.mxu0
        %v695 = vadd.f32 %v426, %v694
        %v696 = vpop.f32.mrf.mxu0
        %v697 = vadd.f32 %v426, %v696
        %698 = vmatmul.bf16.gmra.mxu0 %v682
        %v699 = vpop.f32.mrf.mxu0
        %v700 = vadd.f32 %v426, %v699
        %v701 = vpop.f32.mrf.mxu0
        %v702 = vadd.f32 %v426, %v701
        %703 = vmatmul.bf16.gmra.mxu0 %v683
        %v704 = vpop.f32.mrf.mxu0
        %v705 = vadd.f32 %v426, %v704
        %v706 = vpop.f32.mrf.mxu0
        %v707 = vadd.f32 %v426, %v706
        %708 = vmatmul.bf16.gmra.mxu0 %v684
        %v709 = vpop.f32.mrf.mxu0
        %v710 = vadd.f32 %v426, %v709
        %v711 = vpop.f32.mrf.mxu0
        %v712 = vadd.f32 %v426, %v711
        %713 = vdwg.mxu0
        %s714 = scalar_lea.vmem %s226, 64 [#allocation7]
        %715 = vst [vmem:[%s714] sm:$0xff] %v695
        %716 = vst [vmem:[%s714 + $0x8] sm:$0xff] %v697
        %717 = vst [vmem:[%s714 + $0x10] sm:$0xff] %v700
        %718 = vst [vmem:[%s714 + $0x18] sm:$0xff] %v702
        %719 = vst [vmem:[%s714 + $0x20] sm:$0xff] %v705
        %720 = vst [vmem:[%s714 + $0x28] sm:$0xff] %v707
        %721 = vst [vmem:[%s714 + $0x30] sm:$0xff] %v710
        %722 = vst [vmem:[%s714 + $0x38] sm:$0xff] %v712
        %s723 = sand.u32 %s113, 1
        %s724 = scalar_lea.sflag [#allocation4], %s723
        %s725 = sand.u32 %s113, 1
        %s726 = smul.addr %s725, 128
        %s727 = scalar_lea.vmem [#allocation7], %s726
        // Predicated region
        $region41: #{tpu_custom_call.1} parent=31 // pred_check
          %p728 = pneg %p123
        $region42: #{tpu_custom_call.1} parent=31 // pred_check_branch
          %730 = sbr.rel (%p728) target = $region44
        $region43: #{tpu_custom_call.1} parent=31 // pred_region
          %s731 = smul.u32 8, %s26
          %733 = vsyncadd %s724, 0
          %s734 = smul.addr %s25, 16
          %s735 = sadd.s32 %s731, %s734
          %s736 = smul.addr %s735, 8
          %s737 = scalar_lea.hbm %s3, %s736
          %s738 = sshll.u32 %s727, 4
          %s739 = int_to_ptr.vmem [resolvable:$true] %s738
          %s740 = sshll.u32 %s737, 4
          %s741 = int_to_ptr.hbm [resolvable:$true] %s740
          %746 = dma.vmem_to_hbm [thread:$0]  %s739, 2048, %s741, %s724, 128, 128, 8
        $region44: #{tpu_custom_call.1} parent=31 // pred_fallthru
          _
      $region32: #{tpu_custom_call.1} parent=5 // pred_fallthru
        _
      %p747 = scmp.le.s32.totalorder 2, %s16
      // Predicated region
      $region45: #{tpu_custom_call.1} parent=5 // pred_check
        %p748 = pneg %p747
      $region46: #{tpu_custom_call.1} parent=5 // pred_check_branch
        %750 = sbr.rel (%p748) target = $region48
      $region47: #{tpu_custom_call.1} parent=5 // pred_region
        %s751 = ssub.s32 %s16, 2
        // Predicated region
        $region49: #{tpu_custom_call.1} parent=47 // pred_check
          %p752 = pneg %p129
        $region50: #{tpu_custom_call.1} parent=47 // pred_check_branch
          %754 = sbr.rel (%p752) target = $region52
        $region51: #{tpu_custom_call.1} parent=47 // pred_region
          %s755 = sand.u32 %s114, 1
          %s756 = scalar_lea.sflag [#allocation4], %s755
          %s757 = sand.u32 %s114, 1
          %s758 = smul.addr %s757, 128
          %s759 = scalar_lea.vmem [#allocation7], %s758
          %761 = dma.done %s756, 2048
        $region52: #{tpu_custom_call.1} parent=47 // pred_fallthru
          _
      $region48: #{tpu_custom_call.1} parent=5 // pred_fallthru
        _
    $region6: #{tpu_custom_call.1} parent=1 // loop_footer
      %s20 = sadd.s32 1, %s16
    $region7: #{tpu_custom_call.1} parent=1 // loop_footer_branch
      %15 = sbr.rel target = $region3
    $region8: #{tpu_custom_call.1} parent=1 // loop_exit
      _
    %762 = vsyncpa [#allocation3], 1
    %s763 = scalar_lea.sflag [#allocation3], 1
    %764 = vsyncpa %s763, 1
    %765 = vsyncpa [#allocation6], 1
    %766 = vsyncpa [#allocation4], 1
    %s767 = scalar_lea.sflag [#allocation4], 1
    %768 = vsyncpa %s767, 1

// kernel: tpu_custom_call.1
$region0: #{tpu_custom_call.1}
  #allocation0 [shape = 'u32[]', space=smem, size = 0x4, offset = 0x4, fixed_abs, tag = 'smem constant byte address 0x4 - core index']
  #allocation1 [shape = 'u32[72,128]{1,0:T(1,128)}', space=vmem, size = 0x9000, scoped, tag = 'internal scratch']
  %s0 = inlined_call_operand.hbm [shape: f32[2,64,256], index: 0, kind: input, shape index: {}]
  %s1 = inlined_call_operand.hbm [shape: bf16[128,128], index: 1, kind: input, shape index: {}]
  %s2 = inlined_call_operand.vmem [shape: f32[1,128], index: 2, kind: input, shape index: {}]
  %s3 = inlined_call_operand.hbm [shape: f32[2,2,64,128], index: 3, kind: output, shape index: {}]
  %s4 = sld [smem:[#allocation0]]
  $region53: #{tpu_custom_call.1} parent=0
    _
  %s6 = ssub.s32 1, %s4
  %s7 = scalar_select 0, %s6, %s4
  $region1: #{tpu_custom_call.1} parent=0
    #allocation2 [shape = 'u8[131072]{0}', space=vmem, size = 0x20000, scoped, tag = 'input window, operand 0']
    #allocation3 [shape = 's32[2]{0}', space=sflag, size = 0x8, scoped, tag = 'scoped memory for tpu_custom_call.1']
    #allocation4 [shape = 's32[2]{0}', space=sflag, size = 0x8, scoped, tag = 'scoped memory for tpu_custom_call.1']
    #allocation5 [shape = 'u8[32768]{0}', space=vmem, size = 0x8000, scoped, tag = 'input window, operand 1, single buffered']
    #allocation6 [shape = 's32[1]{0}', space=sflag, size = 0x4, scoped, tag = 'scoped memory for tpu_custom_call.1']
    #allocation7 [shape = 'u8[131072]{0}', space=vmem, size = 0x20000, scoped, tag = 'output window, operand 0']
    %8 = vsyncpa [#allocation3], 0
    %s9 = scalar_lea.sflag [#allocation3], 1
    %10 = vsyncpa %s9, 0
    %11 = vsyncpa [#allocation6], 0
    %12 = vsyncpa [#allocation4], 0
    %s13 = scalar_lea.sflag [#allocation4], 1
    %14 = vsyncpa %s13, 0
    loop: start=0, step=1, limit=4
    $region2: #{tpu_custom_call.1} parent=1 // loop_pre_header
      _
    $region3: #{tpu_custom_call.1} parent=1 // loop_header
      %s16 = sphi 0, %s20
      %p17 = scmp.ge.s32.totalorder %s16, 4
      %s23 = sphi 0, %s35
      %s24 = sphi 0, %s31
      %s25 = sphi 0, %s23
      %s26 = sphi 0, %s24
      %s27 = sphi 0, %s25
      %s28 = sphi 0, %s26
      %s40 = sphi 0, %s42
      %s43 = sphi 0, %s40
      %s44 = sphi 0, %s43
      %s60 = sphi 0, %s44
      %s64 = sphi 0, %s64
      %s66 = sphi 0, %s64
      %s67 = sphi 0, %s66
      %s81 = sphi 0, %s67
      %s85 = sphi 0, %s85
      %s87 = sphi 0, %s85
      %s88 = sphi 0, %s87
      %s102 = sphi 0, %s88
      %s110 = sphi 0, %s112
      %s113 = sphi 0, %s110
      %s114 = sphi 0, %s113
      %s130 = sphi 0, %s114
    $region4: #{tpu_custom_call.1} parent=1 // loop_header_branch
      %19 = sbr.rel (%p17) target = $region8
    $region5: #{tpu_custom_call.1} parent=1 // loop_body
      %s21 = ssub.s32 %s16, 1
      %s22 = ssub.s32 %s16, 2
      %s29 = sadd.s32 1, %s24
      %p30 = scmp.ge.s32.totalorder %s29, 1
      %s31 = scalar_select %p30, 0, %s29
      %s32 = sadd.s32 1, %s23
      %s33 = scalar_select %p30, %s32, %s23
      %p34 = scmp.ge.s32.totalorder %s33, 2
      %s35 = scalar_select %p34, 0, %s33
      %s36 = ssub.s32 %s23, %s35
      %s37 = ssub.s32 %s24, %s31
      %s38 = sor.u32 %s36, %s37
      %p39 = scmp.eq.s32.totalorder %s38, 0
      %s41 = sadd.s32 %s40, 1
      %s42 = scalar_select %p39, %s40, %s41
      %p45 = pneg %p39
      %p46 = scmp.eq.s32.totalorder %s16, 1
      %p47 = por %p45, %p46
      %p48 = scmp.ne.s32.totalorder %s40, %s43
      %p49 = scmp.eq.s32.totalorder %s16, 0
      %p50 = por %p48, %p49
      %p51 = scmp.ne.s32.totalorder %s40, %s43
      %p52 = scmp.eq.s32.totalorder %s21, 1
      %p53 = por %p51, %p52
      %p54 = scmp.ne.s32.totalorder %s43, %s44
      %p55 = scmp.eq.s32.totalorder %s21, 0
      %p56 = por %p54, %p55
      %p57 = scmp.ne.s32.totalorder %s43, %s44
      %p58 = scmp.eq.s32.totalorder %s22, 1
      %p59 = por %p57, %p58
      %p61 = scmp.ne.s32.totalorder %s44, %s60
      %p62 = scmp.eq.s32.totalorder %s22, 0
      %p63 = por %p61, %p62
      %s65 = sadd.s32 %s64, 1
      %p68 = scmp.eq.s32.totalorder %s16, 1
      %p69 = scmp.ne.s32.totalorder %s64, %s66
      %p70 = scmp.eq.s32.totalorder %s16, 0
      %p71 = por %p69, %p70
      %p72 = scmp.ne.s32.totalorder %s64, %s66
      %p73 = scmp.eq.s32.totalorder %s21, 1
      %p74 = por %p72, %p73
      %p75 = scmp.ne.s32.totalorder %s66, %s67
      %p76 = scmp.eq.s32.totalorder %s21, 0
      %p77 = por %p75, %p76
      %p78 = scmp.ne.s32.totalorder %s66, %s67
      %p79 = scmp.eq.s32.totalorder %s22, 1
      %p80 = por %p78, %p79
      %p82 = scmp.ne.s32.totalorder %s67, %s81
      %p83 = scmp.eq.s32.totalorder %s22, 0
      %p84 = por %p82, %p83
      %s86 = sadd.s32 %s85, 1
      %p89 = scmp.eq.s32.totalorder %s16, 1
      %p90 = scmp.ne.s32.totalorder %s85, %s87
      %p91 = scmp.eq.s32.totalorder %s16, 0
      %p92 = por %p90, %p91
      %p93 = scmp.ne.s32.totalorder %s85, %s87
      %p94 = scmp.eq.s32.totalorder %s21, 1
      %p95 = por %p93, %p94
      %p96 = scmp.ne.s32.totalorder %s87, %s88
      %p97 = scmp.eq.s32.totalorder %s21, 0
      %p98 = por %p96, %p97
      %p99 = scmp.ne.s32.totalorder %s87, %s88
      %p100 = scmp.eq.s32.totalorder %s22, 1
      %p101 = por %p99, %p100
      %p103 = scmp.ne.s32.totalorder %s88, %s102
      %p104 = scmp.eq.s32.totalorder %s22, 0
      %p105 = por %p103, %p104
      %s106 = ssub.s32 %s23, %s35
      %s107 = ssub.s32 %s24, %s31
      %s108 = sor.u32 %s106, %s107
      %p109 = scmp.eq.s32.totalorder %s108, 0
      %s111 = sadd.s32 %s110, 1
      %s112 = scalar_select %p109, %s110, %s111
      %p115 = pneg %p109
      %p116 = scmp.eq.s32.totalorder %s16, 1
      %p117 = por %p115, %p116
      %p118 = scmp.ne.s32.totalorder %s110, %s113
      %p119 = scmp.eq.s32.totalorder %s16, 0
      %p120 = por %p118, %p119
      %p121 = scmp.ne.s32.totalorder %s110, %s113
      %p122 = scmp.eq.s32.totalorder %s21, 1
      %p123 = por %p121, %p122
      %p124 = scmp.ne.s32.totalorder %s113, %s114
      %p125 = scmp.eq.s32.totalorder %s21, 0
      %p126 = por %p124, %p125
      %p127 = scmp.ne.s32.totalorder %s113, %s114
      %p128 = scmp.eq.s32.totalorder %s22, 1
      %p129 = por %p127, %p128
      %p131 = scmp.ne.s32.totalorder %s114, %s130
      %p132 = scmp.eq.s32.totalorder %s22, 0
      %p133 = por %p131, %p132
      %p134 = scmp.le.s32.totalorder 1, %s16
      %p135 = scmp.lt.s32.totalorder %s16, 3
      %p136 = pnand %p134, %p135
      %p137 = pneg %p136
      // Predicated region
      $region9: #{tpu_custom_call.1} parent=5 // pred_check
        _
      $region10: #{tpu_custom_call.1} parent=5 // pred_check_branch
        %139 = sbr.rel (%p136) target = $region12
      $region11: #{tpu_custom_call.1} parent=5 // pred_region
        %s140 = ssub.s32 %s16, 1
        // Predicated region
        $region13: #{tpu_custom_call.1} parent=11 // pred_check
          %p141 = pneg %p77
        $region14: #{tpu_custom_call.1} parent=11 // pred_check_branch
          %143 = sbr.rel (%p141) target = $region16
        $region15: #{tpu_custom_call.1} parent=11 // pred_region
          %145 = vsyncadd [#allocation6], 0
          %s146 = sshll.u32 %s1, 4
          %s147 = int_to_ptr.hbm [resolvable:$true] %s146
          %s148 = sshll.u32 [#allocation5], 4
          %s149 = int_to_ptr.vmem [resolvable:$true] %s148
          %154 = dma.hbm_to_vmem [thread:$0]  %s147, 1024, %s149, [#allocation6], 64, 64, 4
        $region16: #{tpu_custom_call.1} parent=11 // pred_fallthru
          _
        // Predicated region
        $region17: #{tpu_custom_call.1} parent=11 // pred_check
          %p155 = pneg %p98
        $region18: #{tpu_custom_call.1} parent=11 // pred_check_branch
          %157 = sbr.rel (%p155) target = $region20
        $region19: #{tpu_custom_call.1} parent=11 // pred_region
          _
        $region20: #{tpu_custom_call.1} parent=11 // pred_fallthru
          _
      $region12: #{tpu_custom_call.1} parent=5 // pred_fallthru
        _
      %p158 = scmp.lt.s32.totalorder %s16, 2
      // Predicated region
      $region21: #{tpu_custom_call.1} parent=5 // pred_check
        %p159 = pneg %p158
      $region22: #{tpu_custom_call.1} parent=5 // pred_check_branch
        %161 = sbr.rel (%p159) target = $region24
      $region23: #{tpu_custom_call.1} parent=5 // pred_region
        // Predicated region
        $region25: #{tpu_custom_call.1} parent=23 // pred_check
          %p162 = pneg %p50
        $region26: #{tpu_custom_call.1} parent=23 // pred_check_branch
          %164 = sbr.rel (%p162) target = $region28
        $region27: #{tpu_custom_call.1} parent=23 // pred_region
          %s165 = sand.u32 %s40, 1
          %s166 = scalar_lea.sflag [#allocation3], %s165
          %s167 = sand.u32 %s40, 1
          %s168 = smul.addr %s167, 128
          %s169 = scalar_lea.vmem [#allocation2], %s168
          %s170 = smul.u32 8, %s24
          %172 = vsyncadd %s166, 0
          %s173 = smul.addr %s170, 2
          %s174 = smul.addr %s23, 16
          %s175 = sadd.s32 %s173, %s174
          %s176 = smul.addr %s175, 8
          %s177 = scalar_lea.hbm %s0, %s176
          %s178 = sshll.u32 %s177, 4
          %s179 = int_to_ptr.hbm [resolvable:$true] %s178
          %s180 = sshll.u32 %s169, 4
          %s181 = int_to_ptr.vmem [resolvable:$true] %s180
          %186 = dma.hbm_to_vmem [thread:$0]  %s179, 2048, %s181, %s166, 256, 256, 16
        $region28: #{tpu_custom_call.1} parent=23 // pred_fallthru
          _
      $region24: #{tpu_custom_call.1} parent=5 // pred_fallthru
        _
      %p187 = scmp.le.s32.totalorder 1, %s16
      %p188 = scmp.lt.s32.totalorder %s16, 3
      %p189 = pnand %p187, %p188
      %p190 = pneg %p189
      // Predicated region
      $region29: #{tpu_custom_call.1} parent=5 // pred_check
        _
      $region30: #{tpu_custom_call.1} parent=5 // pred_check_branch
        %192 = sbr.rel (%p189) target = $region32
      $region31: #{tpu_custom_call.1} parent=5 // pred_region
        %s193 = ssub.s32 %s16, 1
        %s194 = sand.u32 %s43, 1
        %s195 = scalar_lea.sflag [#allocation3], %s194
        %s196 = sand.u32 %s43, 1
        %s197 = smul.addr %s196, 128
        %s198 = scalar_lea.vmem [#allocation2], %s197
        // Predicated region
        $region33: #{tpu_custom_call.1} parent=31 // pred_check
          %p199 = pneg %p56
        $region34: #{tpu_custom_call.1} parent=31 // pred_check_branch
          %201 = sbr.rel (%p199) target = $region36
        $region35: #{tpu_custom_call.1} parent=31 // pred_region
          %203 = dma.done %s195, 2048
        $region36: #{tpu_custom_call.1} parent=31 // pred_fallthru
          _
        // Predicated region
        $region37: #{tpu_custom_call.1} parent=31 // pred_check
          %p204 = pneg %p77
        $region38: #{tpu_custom_call.1} parent=31 // pred_check_branch
          %206 = sbr.rel (%p204) target = $region40
        $region39: #{tpu_custom_call.1} parent=31 // pred_region
          %208 = dma.done [#allocation6], 1024
        $region40: #{tpu_custom_call.1} parent=31 // pred_fallthru
          _
        %s209 = sand.u32 %s43, 1
        %s210 = scalar_lea.sflag [#allocation3], %s209
        %s211 = sand.u32 %s43, 1
        %s212 = smul.addr %s211, 128
        %s213 = scalar_lea.vmem [#allocation2], %s212
        %p214 = pneg %p56
        %p215 = pneg %p53
        %p216 = pneg %p77
        %p217 = pneg %p74
        %p218 = pneg %p98
        %p219 = pneg %p95
        %p220 = pneg %p126
        %p221 = pneg %p123
        %s222 = sand.u32 %s113, 1
        %s223 = scalar_lea.sflag [#allocation4], %s222
        %s224 = sand.u32 %s113, 1
        %s225 = smul.addr %s224, 128
        %s226 = scalar_lea.vmem [#allocation7], %s225
        %s227 = smul.u32 8, %s26
        %s228 = smul.u32 8, %s26
        %v229 = vld [vmem:[#allocation5] sm:$0xf]
        %v230 = vld [vmem:[#allocation5 + $0x4] sm:$0xf]
        %v231 = vld [vmem:[#allocation5 + $0x8] sm:$0xf]
        %v232 = vld [vmem:[#allocation5 + $0xc] sm:$0xf]
        %v233 = vld [vmem:[#allocation5 + $0x10] sm:$0xf]
        %v234 = vld [vmem:[#allocation5 + $0x14] sm:$0xf]
        %v235 = vld [vmem:[#allocation5 + $0x18] sm:$0xf]
        %v236 = vld [vmem:[#allocation5 + $0x1c] sm:$0xf]
        %v237 = vld [vmem:[#allocation5 + $0x20] sm:$0xf]
        %v238 = vld [vmem:[#allocation5 + $0x24] sm:$0xf]
        %v239 = vld [vmem:[#allocation5 + $0x28] sm:$0xf]
        %v240 = vld [vmem:[#allocation5 + $0x2c] sm:$0xf]
        %v241 = vld [vmem:[#allocation5 + $0x30] sm:$0xf]
        %v242 = vld [vmem:[#allocation5 + $0x34] sm:$0xf]
        %v243 = vld [vmem:[#allocation5 + $0x38] sm:$0xf]
        %v244 = vld [vmem:[#allocation5 + $0x3c] sm:$0xf]
        %v245 = vld [vmem:[%s2] sm:$0x1]
        %v246 = vld [vmem:[%s198] sm:$0xff]
        %v247 = vld [vmem:[%s198 + $0x10] sm:$0xff]
        %v248 = vld [vmem:[%s198 + $0x20] sm:$0xff]
        %v249 = vld [vmem:[%s198 + $0x30] sm:$0xff]
        %v250 = vld [vmem:[%s198 + $0x40] sm:$0xff]
        %v251 = vld [vmem:[%s198 + $0x50] sm:$0xff]
        %v252 = vld [vmem:[%s198 + $0x60] sm:$0xff]
        %v253 = vld [vmem:[%s198 + $0x70] sm:$0xff]
        %254 = vadd.xlane.f32.xlu0 %v246
        %v255 = vpop.xlane.xlu0 %254
        %256 = vadd.xlane.f32.xlu0 %v247
        %v257 = vpop.xlane.xlu0 %256
        %258 = vadd.xlane.f32.xlu0 %v248
        %v259 = vpop.xlane.xlu0 %258
        %260 = vadd.xlane.f32.xlu0 %v249
        %v261 = vpop.xlane.xlu0 %260
        %262 = vadd.xlane.f32.xlu0 %v250
        %v263 = vpop.xlane.xlu0 %262
        %264 = vadd.xlane.f32.xlu0 %v251
        %v265 = vpop.xlane.xlu0 %264
        %266 = vadd.xlane.f32.xlu0 %v252
        %v267 = vpop.xlane.xlu0 %266
        %268 = vadd.xlane.f32.xlu0 %v253
        %v269 = vpop.xlane.xlu0 %268
        %v270 = vrcp.pop 128.0
        %v271 = vmul.f32 128.0, %v270
        %v272 = vsub.f32 1.0, %v271
        %v273 = vmul.f32 %v270, %v272
        %v274 = vadd.f32 %v270, %v273
        %vm275 = vweird.f32 %v270
        %v276 = vsel %vm275, %v270, %v274
        %v277 = vmul.f32 %v255, %v276
        %v278 = vmul.f32 %v257, %v276
        %v279 = vmul.f32 %v259, %v276
        %v280 = vmul.f32 %v261, %v276
        %v281 = vmul.f32 %v263, %v276
        %v282 = vmul.f32 %v265, %v276
        %v283 = vmul.f32 %v267, %v276
        %v284 = vmul.f32 %v269, %v276
        %v285 = vsub.f32 %v246, %v277
        %v286 = vsub.f32 %v247, %v278
        %v287 = vsub.f32 %v248, %v279
        %v288 = vsub.f32 %v249, %v280
        %v289 = vsub.f32 %v250, %v281
        %v290 = vsub.f32 %v251, %v282
        %v291 = vsub.f32 %v252, %v283
        %v292 = vsub.f32 %v253, %v284
        %v293 = vmul.f32 %v285, %v285
        %v294 = vmul.f32 %v286, %v286
        %v295 = vmul.f32 %v287, %v287
        %v296 = vmul.f32 %v288, %v288
        %v297 = vmul.f32 %v289, %v289
        %v298 = vmul.f32 %v290, %v290
        %v299 = vmul.f32 %v291, %v291
        %v300 = vmul.f32 %v292, %v292
        %301 = vadd.xlane.f32.xlu0 %v293
        %v302 = vpop.xlane.xlu0 %301
        %303 = vadd.xlane.f32.xlu0 %v294
        %v304 = vpop.xlane.xlu0 %303
        %305 = vadd.xlane.f32.xlu0 %v295
        %v306 = vpop.xlane.xlu0 %305
        %307 = vadd.xlane.f32.xlu0 %v296
        %v308 = vpop.xlane.xlu0 %307
        %309 = vadd.xlane.f32.xlu0 %v297
        %v310 = vpop.xlane.xlu0 %309
        %311 = vadd.xlane.f32.xlu0 %v298
        %v312 = vpop.xlane.xlu0 %311
        %313 = vadd.xlane.f32.xlu0 %v299
        %v314 = vpop.xlane.xlu0 %313
        %315 = vadd.xlane.f32.xlu0 %v300
        %v316 = vpop.xlane.xlu0 %315
        %v317 = vmul.f32 %v302, %v276
        %v318 = vmul.f32 %v304, %v276
        %v319 = vmul.f32 %v306, %v276
        %v320 = vmul.f32 %v308, %v276
        %v321 = vmul.f32 %v310, %v276
        %v322 = vmul.f32 %v312, %v276
        %v323 = vmul.f32 %v314, %v276
        %v324 = vmul.f32 %v316, %v276
        %v325 = vadd.f32 %v317, 1e-05
        %v326 = vadd.f32 %v318, 1e-05
        %v327 = vadd.f32 %v319, 1e-05
        %v328 = vadd.f32 %v320, 1e-05
        %v329 = vadd.f32 %v321, 1e-05
        %v330 = vadd.f32 %v322, 1e-05
        %v331 = vadd.f32 %v323, 1e-05
        %v332 = vadd.f32 %v324, 1e-05
        %v333 = vrsqrt.pop %v325
        %v334 = vmul.f32 %v333, %v325
        %v335 = vmul.f32 %v334, %v333
        %v336 = vmul.f32 0.5, %v335
        %v337 = vsub.f32 1.5, %v336
        %v338 = vmul.f32 %v333, %v337
        %vm339 = vweird.f32 %v325
        %vm340 = vweird.f32 %v333
        %vm341 = vmor %vm339, %vm340
        %v342 = vsel %vm341, %v333, %v338
        %v343 = vrsqrt.pop %v326
        %v344 = vmul.f32 %v343, %v326
        %v345 = vmul.f32 %v344, %v343
        %v346 = vmul.f32 0.5, %v345
        %v347 = vsub.f32 1.5, %v346
        %v348 = vmul.f32 %v343, %v347
        %vm349 = vweird.f32 %v326
        %vm350 = vweird.f32 %v343
        %vm351 = vmor %vm349, %vm350
        %v352 = vsel %vm351, %v343, %v348
        %v353 = vrsqrt.pop %v327
        %v354 = vmul.f32 %v353, %v327
        %v355 = vmul.f32 %v354, %v353
        %v356 = vmul.f32 0.5, %v355
        %v357 = vsub.f32 1.5, %v356
        %v358 = vmul.f32 %v353, %v357
        %vm359 = vweird.f32 %v327
        %vm360 = vweird.f32 %v353
        %vm361 = vmor %vm359, %vm360
        %v362 = vsel %vm361, %v353, %v358
        %v363 = vrsqrt.pop %v328
        %v364 = vmul.f32 %v363, %v328
        %v365 = vmul.f32 %v364, %v363
        %v366 = vmul.f32 0.5, %v365
        %v367 = vsub.f32 1.5, %v366
        %v368 = vmul.f32 %v363, %v367
        %vm369 = vweird.f32 %v328
        %vm370 = vweird.f32 %v363
        %vm371 = vmor %vm369, %vm370
        %v372 = vsel %vm371, %v363, %v368
        %v373 = vrsqrt.pop %v329
        %v374 = vmul.f32 %v373, %v329
        %v375 = vmul.f32 %v374, %v373
        %v376 = vmul.f32 0.5, %v375
        %v377 = vsub.f32 1.5, %v376
        %v378 = vmul.f32 %v373, %v377
        %vm379 = vweird.f32 %v329
        %vm380 = vweird.f32 %v373
        %vm381 = vmor %vm379, %vm380
        %v382 = vsel %vm381, %v373, %v378
        %v383 = vrsqrt.pop %v330
        %v384 = vmul.f32 %v383, %v330
        %v385 = vmul.f32 %v384, %v383
        %v386 = vmul.f32 0.5, %v385
        %v387 = vsub.f32 1.5, %v386
        %v388 = vmul.f32 %v383, %v387
        %vm389 = vweird.f32 %v330
        %vm390 = vweird.f32 %v383
        %vm391 = vmor %vm389, %vm390
        %v392 = vsel %vm391, %v383, %v388
        %v393 = vrsqrt.pop %v331
        %v394 = vmul.f32 %v393, %v331
        %v395 = vmul.f32 %v394, %v393
        %v396 = vmul.f32 0.5, %v395
        %v397 = vsub.f32 1.5, %v396
        %v398 = vmul.f32 %v393, %v397
        %vm399 = vweird.f32 %v331
        %vm400 = vweird.f32 %v393
        %vm401 = vmor %vm399, %vm400
        %v402 = vsel %vm401, %v393, %v398
        %v403 = vrsqrt.pop %v332
        %v404 = vmul.f32 %v403, %v332
        %v405 = vmul.f32 %v404, %v403
        %v406 = vmul.f32 0.5, %v405
        %v407 = vsub.f32 1.5, %v406
        %v408 = vmul.f32 %v403, %v407
        %vm409 = vweird.f32 %v332
        %vm410 = vweird.f32 %v403
        %vm411 = vmor %vm409, %vm410
        %v412 = vsel %vm411, %v403, %v408
        %v413 = vmul.f32 %v285, %v342
        %v414 = vmul.f32 %v286, %v352
        %v415 = vmul.f32 %v287, %v362
        %v416 = vmul.f32 %v288, %v372
        %v417 = vmul.f32 %v289, %v382
        %v418 = vmul.f32 %v290, %v392
        %v419 = vmul.f32 %v291, %v402
        %v420 = vmul.f32 %v292, %v412
        %v421 = vpack.c.bf16 %v414, %v413
        %v422 = vpack.c.bf16 %v416, %v415
        %v423 = vpack.c.bf16 %v418, %v417
        %v424 = vpack.c.bf16 %v420, %v419
        %v426 = vperm.slane %v245, 0
        %v444 = vunpack.c.l.b16 %v229
        %v445 = vunpack.c.l.b16 %v230
        %v446 = vunpack.c.l.b16 %v231
        %v447 = vunpack.c.l.b16 %v232
        %v448 = vunpack.c.l.b16 %v233
        %v449 = vunpack.c.l.b16 %v234
        %v450 = vunpack.c.l.b16 %v235
        %v451 = vunpack.c.l.b16 %v236
        %v452 = vunpack.c.l.b16 %v237
        %v453 = vunpack.c.l.b16 %v238
        %v454 = vunpack.c.l.b16 %v239
        %v455 = vunpack.c.l.b16 %v240
        %v456 = vunpack.c.l.b16 %v241
        %v457 = vunpack.c.l.b16 %v242
        %v458 = vunpack.c.l.b16 %v243
        %v459 = vunpack.c.l.b16 %v244
        %v460 = vpack.c.b16 %v445, %v444
        %v461 = vpack.c.b16 %v447, %v446
        %v462 = vpack.c.b16 %v449, %v448
        %v463 = vpack.c.b16 %v451, %v450
        %v464 = vpack.c.b16 %v453, %v452
        %v465 = vpack.c.b16 %v455, %v454
        %v466 = vpack.c.b16 %v457, %v456
        %v467 = vpack.c.b16 %v459, %v458
        %476 = vmatpush.bf16.msra.mxu0 %v467
        %477 = vmatpush.bf16.msra.mxu0 %v466
        %478 = vmatpush.bf16.msra.mxu0 %v465
        %479 = vmatpush.bf16.msra.mxu0 %v464
        %480 = vmatpush.bf16.msra.mxu0 %v463
        %481 = vmatpush.bf16.msra.mxu0 %v462
        %482 = vmatpush.bf16.msra.mxu0 %v461
        %483 = vmatpush.bf16.msra.mxu0 %v460
        %484 = vmatmul.bf16.gmra.mxu0 %v421
        %v485 = vpop.f32.mrf.mxu0
        %v486 = vadd.f32 %v426, %v485
        %v487 = vpop.f32.mrf.mxu0
        %v488 = vadd.f32 %v426, %v487
        %489 = vmatmul.bf16.gmra.mxu0 %v422
        %v490 = vpop.f32.mrf.mxu0
        %v491 = vadd.f32 %v426, %v490
        %v492 = vpop.f32.mrf.mxu0
        %v493 = vadd.f32 %v426, %v492
        %494 = vmatmul.bf16.gmra.mxu0 %v423
        %v495 = vpop.f32.mrf.mxu0
        %v496 = vadd.f32 %v426, %v495
        %v497 = vpop.f32.mrf.mxu0
        %v498 = vadd.f32 %v426, %v497
        %499 = vmatmul.bf16.gmra.mxu0 %v424
        %v500 = vpop.f32.mrf.mxu0
        %v501 = vadd.f32 %v426, %v500
        %v502 = vpop.f32.mrf.mxu0
        %v503 = vadd.f32 %v426, %v502
        %504 = vdwg.mxu0
        %505 = vst [vmem:[%s226] sm:$0xff] %v486
        %506 = vst [vmem:[%s226 + $0x8] sm:$0xff] %v488
        %507 = vst [vmem:[%s226 + $0x10] sm:$0xff] %v491
        %508 = vst [vmem:[%s226 + $0x18] sm:$0xff] %v493
        %509 = vst [vmem:[%s226 + $0x20] sm:$0xff] %v496
        %510 = vst [vmem:[%s226 + $0x28] sm:$0xff] %v498
        %511 = vst [vmem:[%s226 + $0x30] sm:$0xff] %v501
        %512 = vst [vmem:[%s226 + $0x38] sm:$0xff] %v503
        %v513 = vld [vmem:[%s198 + $0x8] sm:$0xff]
        %v514 = vld [vmem:[%s198 + $0x18] sm:$0xff]
        %v515 = vld [vmem:[%s198 + $0x28] sm:$0xff]
        %v516 = vld [vmem:[%s198 + $0x38] sm:$0xff]
        %v517 = vld [vmem:[%s198 + $0x48] sm:$0xff]
        %v518 = vld [vmem:[%s198 + $0x58] sm:$0xff]
        %v519 = vld [vmem:[%s198 + $0x68] sm:$0xff]
        %v520 = vld [vmem:[%s198 + $0x78] sm:$0xff]
        %521 = vadd.xlane.f32.xlu0 %v513
        %v522 = vpop.xlane.xlu0 %521
        %523 = vadd.xlane.f32.xlu0 %v514
        %v524 = vpop.xlane.xlu0 %523
        %525 = vadd.xlane.f32.xlu0 %v515
        %v526 = vpop.xlane.xlu0 %525
        %527 = vadd.xlane.f32.xlu0 %v516
        %v528 = vpop.xlane.xlu0 %527
        %529 = vadd.xlane.f32.xlu0 %v517
        %v530 = vpop.xlane.xlu0 %529
        %531 = vadd.xlane.f32.xlu0 %v518
        %v532 = vpop.xlane.xlu0 %531
        %533 = vadd.xlane.f32.xlu0 %v519
        %v534 = vpop.xlane.xlu0 %533
        %535 = vadd.xlane.f32.xlu0 %v520
        %v536 = vpop.xlane.xlu0 %535
        %v537 = vmul.f32 %v522, %v276
        %v538 = vmul.f32 %v524, %v276
        %v539 = vmul.f32 %v526, %v276
        %v540 = vmul.f32 %v528, %v276
        %v541 = vmul.f32 %v530, %v276
        %v542 = vmul.f32 %v532, %v276
        %v543 = vmul.f32 %v534, %v276
        %v544 = vmul.f32 %v536, %v276
        %v545 = vsub.f32 %v513, %v537
        %v546 = vsub.f32 %v514, %v538
        %v547 = vsub.f32 %v515, %v539
        %v548 = vsub.f32 %v516, %v540
        %v549 = vsub.f32 %v517, %v541
        %v550 = vsub.f32 %v518, %v542
        %v551 = vsub.f32 %v519, %v543
        %v552 = vsub.f32 %v520, %v544
        %v553 = vmul.f32 %v545, %v545
        %v554 = vmul.f32 %v546, %v546
        %v555 = vmul.f32 %v547, %v547
        %v556 = vmul.f32 %v548, %v548
        %v557 = vmul.f32 %v549, %v549
        %v558 = vmul.f32 %v550, %v550
        %v559 = vmul.f32 %v551, %v551
        %v560 = vmul.f32 %v552, %v552
        %561 = vadd.xlane.f32.xlu0 %v553
        %v562 = vpop.xlane.xlu0 %561
        %563 = vadd.xlane.f32.xlu0 %v554
        %v564 = vpop.xlane.xlu0 %563
        %565 = vadd.xlane.f32.xlu0 %v555
        %v566 = vpop.xlane.xlu0 %565
        %567 = vadd.xlane.f32.xlu0 %v556
        %v568 = vpop.xlane.xlu0 %567
        %569 = vadd.xlane.f32.xlu0 %v557
        %v570 = vpop.xlane.xlu0 %569
        %571 = vadd.xlane.f32.xlu0 %v558
        %v572 = vpop.xlane.xlu0 %571
        %573 = vadd.xlane.f32.xlu0 %v559
        %v574 = vpop.xlane.xlu0 %573
        %575 = vadd.xlane.f32.xlu0 %v560
        %v576 = vpop.xlane.xlu0 %575
        %v577 = vmul.f32 %v562, %v276
        %v578 = vmul.f32 %v564, %v276
        %v579 = vmul.f32 %v566, %v276
        %v580 = vmul.f32 %v568, %v276
        %v581 = vmul.f32 %v570, %v276
        %v582 = vmul.f32 %v572, %v276
        %v583 = vmul.f32 %v574, %v276
        %v584 = vmul.f32 %v576, %v276
        %v585 = vadd.f32 %v577, 1e-05
        %v586 = vadd.f32 %v578, 1e-05
        %v587 = vadd.f32 %v579, 1e-05
        %v588 = vadd.f32 %v580, 1e-05
        %v589 = vadd.f32 %v581, 1e-05
        %v590 = vadd.f32 %v582, 1e-05
        %v591 = vadd.f32 %v583, 1e-05
        %v592 = vadd.f32 %v584, 1e-05
        %v593 = vrsqrt.pop %v585
        %v594 = vmul.f32 %v593, %v585
        %v595 = vmul.f32 %v594, %v593
        %v596 = vmul.f32 0.5, %v595
        %v597 = vsub.f32 1.5, %v596
        %v598 = vmul.f32 %v593, %v597
        %vm599 = vweird.f32 %v585
        %vm600 = vweird.f32 %v593
        %vm601 = vmor %vm599, %vm600
        %v602 = vsel %vm601, %v593, %v598
        %v603 = vrsqrt.pop %v586
        %v604 = vmul.f32 %v603, %v586
        %v605 = vmul.f32 %v604, %v603
        %v606 = vmul.f32 0.5, %v605
        %v607 = vsub.f32 1.5, %v606
        %v608 = vmul.f32 %v603, %v607
        %vm609 = vweird.f32 %v586
        %vm610 = vweird.f32 %v603
        %vm611 = vmor %vm609, %vm610
        %v612 = vsel %vm611, %v603, %v608
        %v613 = vrsqrt.pop %v587
        %v614 = vmul.f32 %v613, %v587
        %v615 = vmul.f32 %v614, %v613
        %v616 = vmul.f32 0.5, %v615
        %v617 = vsub.f32 1.5, %v616
        %v618 = vmul.f32 %v613, %v617
        %vm619 = vweird.f32 %v587
        %vm620 = vweird.f32 %v613
        %vm621 = vmor %vm619, %vm620
        %v622 = vsel %vm621, %v613, %v618
        %v623 = vrsqrt.pop %v588
        %v624 = vmul.f32 %v623, %v588
        %v625 = vmul.f32 %v624, %v623
        %v626 = vmul.f32 0.5, %v625
        %v627 = vsub.f32 1.5, %v626
        %v628 = vmul.f32 %v623, %v627
        %vm629 = vweird.f32 %v588
        %vm630 = vweird.f32 %v623
        %vm631 = vmor %vm629, %vm630
        %v632 = vsel %vm631, %v623, %v628
        %v633 = vrsqrt.pop %v589
        %v634 = vmul.f32 %v633, %v589
        %v635 = vmul.f32 %v634, %v633
        %v636 = vmul.f32 0.5, %v635
        %v637 = vsub.f32 1.5, %v636
        %v638 = vmul.f32 %v633, %v637
        %vm639 = vweird.f32 %v589
        %vm640 = vweird.f32 %v633
        %vm641 = vmor %vm639, %vm640
        %v642 = vsel %vm641, %v633, %v638
        %v643 = vrsqrt.pop %v590
        %v644 = vmul.f32 %v643, %v590
        %v645 = vmul.f32 %v644, %v643
        %v646 = vmul.f32 0.5, %v645
        %v647 = vsub.f32 1.5, %v646
        %v648 = vmul.f32 %v643, %v647
        %vm649 = vweird.f32 %v590
        %vm650 = vweird.f32 %v643
        %vm651 = vmor %vm649, %vm650
        %v652 = vsel %vm651, %v643, %v648
        %v653 = vrsqrt.pop %v591
        %v654 = vmul.f32 %v653, %v591
        %v655 = vmul.f32 %v654, %v653
        %v656 = vmul.f32 0.5, %v655
        %v657 = vsub.f32 1.5, %v656
        %v658 = vmul.f32 %v653, %v657
        %vm659 = vweird.f32 %v591
        %vm660 = vweird.f32 %v653
        %vm661 = vmor %vm659, %vm660
        %v662 = vsel %vm661, %v653, %v658
        %v663 = vrsqrt.pop %v592
        %v664 = vmul.f32 %v663, %v592
        %v665 = vmul.f32 %v664, %v663
        %v666 = vmul.f32 0.5, %v665
        %v667 = vsub.f32 1.5, %v666
        %v668 = vmul.f32 %v663, %v667
        %vm669 = vweird.f32 %v592
        %vm670 = vweird.f32 %v663
        %vm671 = vmor %vm669, %vm670
        %v672 = vsel %vm671, %v663, %v668
        %v673 = vmul.f32 %v545, %v602
        %v674 = vmul.f32 %v546, %v612
        %v675 = vmul.f32 %v547, %v622
        %v676 = vmul.f32 %v548, %v632
        %v677 = vmul.f32 %v549, %v642
        %v678 = vmul.f32 %v550, %v652
        %v679 = vmul.f32 %v551, %v662
        %v680 = vmul.f32 %v552, %v672
        %v681 = vpack.c.bf16 %v674, %v673
        %v682 = vpack.c.bf16 %v676, %v675
        %v683 = vpack.c.bf16 %v678, %v677
        %v684 = vpack.c.bf16 %v680, %v679
        %685 = vmatpush.bf16.msra.mxu0 %v467
        %686 = vmatpush.bf16.msra.mxu0 %v466
        %687 = vmatpush.bf16.msra.mxu0 %v465
        %688 = vmatpush.bf16.msra.mxu0 %v464
        %689 = vmatpush.bf16.msra.mxu0 %v463
        %690 = vmatpush.bf16.msra.mxu0 %v462
        %691 = vmatpush.bf16.msra.mxu0 %v461
        %692 = vmatpush.bf16.msra.mxu0 %v460
        %693 = vmatmul.bf16.gmra.mxu0 %v681
        %v694 = vpop.f32.mrf.mxu0
        %v695 = vadd.f32 %v426, %v694
        %v696 = vpop.f32.mrf.mxu0
        %v697 = vadd.f32 %v426, %v696
        %698 = vmatmul.bf16.gmra.mxu0 %v682
        %v699 = vpop.f32.mrf.mxu0
        %v700 = vadd.f32 %v426, %v699
        %v701 = vpop.f32.mrf.mxu0
        %v702 = vadd.f32 %v426, %v701
        %703 = vmatmul.bf16.gmra.mxu0 %v683
        %v704 = vpop.f32.mrf.mxu0
        %v705 = vadd.f32 %v426, %v704
        %v706 = vpop.f32.mrf.mxu0
        %v707 = vadd.f32 %v426, %v706
        %708 = vmatmul.bf16.gmra.mxu0 %v684
        %v709 = vpop.f32.mrf.mxu0
        %v710 = vadd.f32 %v426, %v709
        %v711 = vpop.f32.mrf.mxu0
        %v712 = vadd.f32 %v426, %v711
        %713 = vdwg.mxu0
        %s714 = scalar_lea.vmem %s226, 64 [#allocation7]
        %715 = vst [vmem:[%s714] sm:$0xff] %v695
        %716 = vst [vmem:[%s714 + $0x8] sm:$0xff] %v697
        %717 = vst [vmem:[%s714 + $0x10] sm:$0xff] %v700
        %718 = vst [vmem:[%s714 + $0x18] sm:$0xff] %v702
        %719 = vst [vmem:[%s714 + $0x20] sm:$0xff] %v705
        %720 = vst [vmem:[%s714 + $0x28] sm:$0xff] %v707
        %721 = vst [vmem:[%s714 + $0x30] sm:$0xff] %v710
        %722 = vst [vmem:[%s714 + $0x38] sm:$0xff] %v712
        %s723 = sand.u32 %s113, 1
        %s724 = scalar_lea.sflag [#allocation4], %s723
        %s725 = sand.u32 %s113, 1
        %s726 = smul.addr %s725, 128
        %s727 = scalar_lea.vmem [#allocation7], %s726
        // Predicated region
        $region41: #{tpu_custom_call.1} parent=31 // pred_check
          %p728 = pneg %p123
        $region42: #{tpu_custom_call.1} parent=31 // pred_check_branch
          %730 = sbr.rel (%p728) target = $region44
        $region43: #{tpu_custom_call.1} parent=31 // pred_region
          %s731 = smul.u32 8, %s26
          %733 = vsyncadd %s724, 0
          %s734 = smul.addr %s25, 16
          %s735 = sadd.s32 %s731, %s734
          %s736 = smul.addr %s735, 8
          %s737 = scalar_lea.hbm %s3, %s736
          %s738 = sshll.u32 %s727, 4
          %s739 = int_to_ptr.vmem [resolvable:$true] %s738
          %s740 = sshll.u32 %s737, 4
          %s741 = int_to_ptr.hbm [resolvable:$true] %s740
          %746 = dma.vmem_to_hbm [thread:$0]  %s739, 2048, %s741, %s724, 128, 128, 8
        $region44: #{tpu_custom_call.1} parent=31 // pred_fallthru
          _
      $region32: #{tpu_custom_call.1} parent=5 // pred_fallthru
        _
      %p747 = scmp.le.s32.totalorder 2, %s16
      // Predicated region
      $region45: #{tpu_custom_call.1} parent=5 // pred_check
        %p748 = pneg %p747
      $region46: #{tpu_custom_call.1} parent=5 // pred_check_branch
        %750 = sbr.rel (%p748) target = $region48
      $region47: #{tpu_custom_call.1} parent=5 // pred_region
        %s751 = ssub.s32 %s16, 2
        // Predicated region
        $region49: #{tpu_custom_call.1} parent=47 // pred_check
          %p752 = pneg %p129
        $region50: #{tpu_custom_call.1} parent=47 // pred_check_branch
          %754 = sbr.rel (%p752) target = $region52
        $region51: #{tpu_custom_call.1} parent=47 // pred_region
          %s755 = sand.u32 %s114, 1
          %s756 = scalar_lea.sflag [#allocation4], %s755
          %s757 = sand.u32 %s114, 1
          %s758 = smul.addr %s757, 128
          %s759 = scalar_lea.vmem [#allocation7], %s758
          %761 = dma.done %s756, 2048
        $region52: #{tpu_custom_call.1} parent=47 // pred_fallthru
          _
      $region48: #{tpu_custom_call.1} parent=5 // pred_fallthru
        _
    $region6: #{tpu_custom_call.1} parent=1 // loop_footer
      %s20 = sadd.s32 1, %s16
    $region7: #{tpu_custom_call.1} parent=1 // loop_footer_branch
      %15 = sbr.rel target = $region3
    $region8: #{tpu_custom_call.1} parent=1 // loop_exit
      _
    %762 = vsyncpa [#allocation3], 1
    %s763 = scalar_lea.sflag [#allocation3], 1
    %764 = vsyncpa %s763, 1
    %765 = vsyncpa [#allocation6], 1
    %766 = vsyncpa [#allocation4], 1
    %s767 = scalar_lea.sflag [#allocation4], 1
    %768 = vsyncpa %s767, 1

</llo_original>
